<compile_context>
chip_gen: v7x
topology: tpu7x:2x2x1
jax: 0.10.0
libtpu: 0.0.40
codegen_flags: <defaults>
</compile_context>

<pallas_src>
import numpy as np
import jax
import jax.numpy as jnp
from jax.experimental import pallas as pl
from jax.experimental.pallas import tpu as pltpu

LN_EPS = 1e-5
GRID_MIN, GRID_MAX = -2.0, 2.0
LANE = 128
SUBLANE = 8


# ---------------------------------------------------------------------------
# Fused kernel body
# ---------------------------------------------------------------------------
def _fastkan_block(x, d_in, gamma, beta, w_fused, bb, grid_vals, inv_denom):
    """FastKANLayer on a zero-column-padded f32 activation x (R, Dp).

    d_in, grid_vals, inv_denom are Python compile-time constants (closure).
    w_fused is the host-stacked [spline (g-major) ; base] bf16 weight, so the
    whole layer is a single MXU matmul with K = (G+1)*Dp.

    Padding invariant (enforced by pack_fastkan): gamma/beta/bb and all padded
    rows/cols of w_fused are exact zeros, so padded xn columns stay 0 and the
    nonzero RBF energy they would otherwise inject is killed by zero weight
    rows.
    """
    # Masked LayerNorm over the first d_in real columns (padded cols of x are 0).
    mask = (jax.lax.broadcasted_iota(jnp.int32, x.shape, 1) < d_in).astype(jnp.float32)
    inv_d = 1.0 / float(d_in)
    mu = jnp.sum(x, axis=-1, keepdims=True) * inv_d
    xc = (x - mu) * mask
    var = jnp.sum(xc * xc, axis=-1, keepdims=True) * inv_d
    xn = xc * jax.lax.rsqrt(var + LN_EPS) * gamma + beta          # gamma/beta zero-padded

    # RBF basis blocks, cast to bf16 immediately (widest intermediate is bf16),
    # plus the silu(x) base-path input, concatenated into one lane-dense operand.
    blocks = [jnp.exp(-jnp.square((xn - c) * inv_denom)).astype(jnp.bfloat16)
              for c in grid_vals]
    base_in = (x * jax.nn.sigmoid(x)).astype(jnp.bfloat16)        # silu in f32, cast at MXU
    operand = jnp.concatenate(blocks + [base_in], axis=-1)        # (R, (G+1)*Dp) bf16

    out = jnp.dot(operand, w_fused, preferred_element_type=jnp.float32)
    return out + bb


def make_fused_kernel(num_layers, conv_d_ins, ro_d_in, num_classes,
                      grid_vals, inv_denom):
    """Build the single fused forward kernel with all metadata closed over."""
    grid_vals = tuple(float(v) for v in grid_vals)
    inv_denom = float(inv_denom)
    conv_d_ins = tuple(int(d) for d in conv_d_ins)
    assert len(conv_d_ins) == num_layers

    def kernel(a_ref, p_ref, x_ref,
               cg_ref, cb_ref, cw_ref, cbb_ref, cgb_ref,
               rg_ref, rb_ref, rw_ref, rbb_ref,
               o_ref):
        h = x_ref[...]                                            # (N, Dp) f32
        a_bf = a_ref[...]                                         # (N, N) bf16 (host-cast)

        for l in range(num_layers):                               # static unroll
            z = _fastkan_block(h, conv_d_ins[l],
                               cg_ref[l], cb_ref[l], cw_ref[l], cbb_ref[l],
                               grid_vals, inv_denom)              # (N, Dp) f32
            # GCNConv aggregation: D^-1/2 (A+I) D^-1/2 @ z + bias.
            # K = num_nodes is tiny here; see TODO above for production tiling.
            y = jnp.dot(a_bf, z.astype(jnp.bfloat16),
                        preferred_element_type=jnp.float32) + cgb_ref[l]
            h = y * jax.nn.sigmoid(y)                             # silu; dropout = identity (eval)

        # global_mean_pool as a matmul with the host-built pooling matrix.
        pooled = jnp.dot(p_ref[...], h.astype(jnp.bfloat16),
                         preferred_element_type=jnp.float32)      # (Bp, Dp) f32

        logits = _fastkan_block(pooled, ro_d_in,
                                rg_ref[...], rb_ref[...], rw_ref[...], rbb_ref[...],
                                grid_vals, inv_denom)

        # log_softmax over the real classes only (padded classes masked out).
        valid = jax.lax.broadcasted_iota(jnp.int32, logits.shape, 1) < num_classes
        m = jnp.max(jnp.where(valid, logits, -1e30), axis=-1, keepdims=True)
        s = logits - m
        zsum = jnp.sum(jnp.where(valid, jnp.exp(s), 0.0), axis=-1, keepdims=True)
        o_ref[...] = s - jnp.log(zsum)                            # full (8,128) lane-dense store

    return kernel


# ---------------------------------------------------------------------------
# pallas_call wrapper: ONE launch for the whole forward
# ---------------------------------------------------------------------------
def fastkagcn_forward(a_norm_bf, p_mean_bf, x_pad, conv_packed, ro_packed, *,
                      conv_d_ins, ro_d_in, num_classes, grid_vals, inv_denom):
    cg, cb, cw, cbb, cgb = conv_packed
    rg, rb, rw, rbb = ro_packed
    num_layers = cw.shape[0]
    bp = p_mean_bf.shape[0]
    dp_out = rw.shape[-1]

    kernel = make_fused_kernel(num_layers, conv_d_ins, ro_d_in, num_classes,
                               grid_vals, inv_denom)
    vmem = pl.BlockSpec(memory_space=pltpu.MemorySpace.VMEM)
    out_pad = pl.pallas_call(
        kernel,
        out_shape=jax.ShapeDtypeStruct((bp, dp_out), jnp.float32),
        in_specs=[vmem] * 12,
        out_specs=vmem,
    )(a_norm_bf, p_mean_bf, x_pad, cg, cb, cw, cbb, cgb, rg, rb, rw, rbb)
    return out_pad


# ---------------------------------------------------------------------------
# Host-side packing: zero-pad to 128 lanes, fuse [spline; base] weight to bf16
# ---------------------------------------------------------------------------
def _pad_cols(n):
    return ((max(n, 1) + LANE - 1) // LANE) * LANE


def _pad_rows(n):
    return ((max(n, 1) + SUBLANE - 1) // SUBLANE) * SUBLANE


def _pad2(a, rows, cols, dtype=jnp.float32):
    out = jnp.zeros((rows, cols), dtype)
    return out.at[:a.shape[0], :a.shape[1]].set(jnp.asarray(a, dtype))


def pack_fastkan(params, d_in, d_out):
    """Pad to lane-dense layout and fuse [spline (g-major); base] into one
    bf16 weight.  All padding is EXACT ZERO by construction — required so the
    masked LayerNorm and the wide RBF matmul ignore the padded columns."""
    g = params['sw'].shape[0]
    dp_in, dp_out = _pad_cols(d_in), _pad_cols(d_out)
    gamma = _pad2(params['gamma'][None, :], 1, dp_in)
    beta = _pad2(params['beta'][None, :], 1, dp_in)
    w = jnp.zeros(((g + 1) * dp_in, dp_out), jnp.float32)
    for gi in range(g):
        w = w.at[gi * dp_in:gi * dp_in + d_in, :d_out].set(params['sw'][gi])
    w = w.at[g * dp_in:g * dp_in + d_in, :d_out].set(params['bw'])
    w = w.astype(jnp.bfloat16)                                    # single MXU operand
    bb = _pad2(params['bb'][None, :], 1, dp_out)
    return gamma, beta, w, bb


def pack_conv_layers(conv_params, gcn_biases, dims):
    """Stack all conv layers' packed weights along a leading layer axis
    (identical padded shapes), so the kernel indexes them with a static l."""
    packs = []
    for p, b, (d_in, d_out) in zip(conv_params, gcn_biases, dims):
        gamma, beta, w, bb = pack_fastkan(p, d_in, d_out)
        gcnb = _pad2(b[None, :], 1, _pad_cols(d_out))
        packs.append((gamma, beta, w, bb, gcnb))
    return tuple(jnp.stack(parts) for parts in zip(*packs))


# ---------------------------------------------------------------------------
# Graph preprocessing + parameter construction (plain JAX / numpy)
# ---------------------------------------------------------------------------
def gcn_norm_dense(edge_index, num_nodes):
    """Dense D^{-1/2}(A + I)D^{-1/2}, matching PyG gcn_norm with self loops."""
    src, dst = edge_index[0], edge_index[1]
    a = jnp.zeros((num_nodes, num_nodes), jnp.float32)
    a = a.at[dst, src].add(1.0)
    a = a + jnp.eye(num_nodes, dtype=jnp.float32)
    deg = jnp.sum(a, axis=1)
    dinv = jnp.where(deg > 0, 1.0 / jnp.sqrt(deg), 0.0)
    return dinv[:, None] * a * dinv[None, :]


def mean_pool_matrix(batch, num_graphs):
    """P[g, n] = 1/|graph g| if batch[n] == g  (global_mean_pool as matmul)."""
    onehot = (batch[None, :] == jnp.arange(num_graphs)[:, None]).astype(jnp.float32)
    counts = jnp.maximum(jnp.sum(onehot, axis=1, keepdims=True), 1.0)
    return onehot / counts


def init_fastkan_params(key, d_in, d_out, g):
    k1, k2, k3 = jax.random.split(key, 3)
    gamma = jnp.ones((d_in,), jnp.float32)
    beta = jnp.zeros((d_in,), jnp.float32)
    sw = 0.1 * jax.random.normal(k1, (g, d_in, d_out), jnp.float32)   # SplineLinear
    bound = 1.0 / np.sqrt(d_in)
    bw = jax.random.uniform(k2, (d_in, d_out), jnp.float32, -bound, bound)
    bb = jax.random.uniform(k3, (d_out,), jnp.float32, -bound, bound)
    return dict(gamma=gamma, beta=beta, sw=sw, bw=bw, bb=bb)


# ---------------------------------------------------------------------------
# Pure-JAX references.  mm_bf16 mirrors the kernel (bf16 MXU operands, f32
# accumulate — the only intentional deviation from PyTorch f32 math); mm_f32
# is the full-f32 semantics used as a loose sanity bound.
# ---------------------------------------------------------------------------
def mm_bf16(a, b):
    return jnp.dot(a.astype(jnp.bfloat16), b.astype(jnp.bfloat16),
                   preferred_element_type=jnp.float32)


def mm_f32(a, b):
    return jnp.dot(a, b, preferred_element_type=jnp.float32)


def ref_fastkan(x, p, grid_vals, denom, mm):
    mu = x.mean(-1, keepdims=True)
    var = ((x - mu) ** 2).mean(-1, keepdims=True)
    xn = (x - mu) * jax.lax.rsqrt(var + LN_EPS) * p['gamma'] + p['beta']
    inv_denom = jnp.float32(1.0 / float(denom))
    g = jnp.asarray(grid_vals, jnp.float32)
    basis = jnp.exp(-jnp.square((xn[:, None, :] - g[None, :, None]) * inv_denom))
    basis = basis.reshape(x.shape[0], -1)                         # g-major, as in kernel
    operand = jnp.concatenate([basis, x * jax.nn.sigmoid(x)], axis=-1)
    w = jnp.concatenate([p['sw'].reshape(-1, p['sw'].shape[-1]), p['bw']], axis=0)
    return mm(operand, w) + p['bb']


def ref_forward(x, a_norm, p_mean, conv_params, gcn_biases, ro_params,
                grid_vals, denom, mm):
    h = x
    for p, b in zip(conv_params, gcn_biases):
        y = mm(a_norm, ref_fastkan(h, p, grid_vals, denom, mm)) + b
        h = y * jax.nn.sigmoid(y)
    pooled = mm(p_mean, h)
    logits = ref_fastkan(pooled, ro_params, grid_vals, denom, mm)
    return jax.nn.log_softmax(logits, axis=1)


# ---------------------------------------------------------------------------
if __name__ == "__main__":
    GNN_LAYERS = 2
    NUM_FEATURES = 8
    HIDDEN_DIM = 32
    NUM_CLASSES = 4
    GRID_SIZE = 4
    NUM_NODES = 16
    NUM_GRAPHS = 2

    grid_vals = np.linspace(GRID_MIN, GRID_MAX, GRID_SIZE)        # fixed RBF centres
    denom = (GRID_MAX - GRID_MIN) / (GRID_SIZE - 1)

    key = jax.random.PRNGKey(0)
    kx, k_l0, k_l1, k_ro, kb0, kb1 = jax.random.split(key, 6)

    # Node features, graph assignment, undirected ring edges per graph.
    x = jax.random.normal(kx, (NUM_NODES, NUM_FEATURES), jnp.float32)
    batch = jnp.concatenate([jnp.zeros(8, jnp.int32), jnp.ones(8, jnp.int32)])
    edges = []
    for base in (0, 8):
        for i in range(8):
            a, b = base + i, base + (i + 1) % 8
            edges.append((a, b))
            edges.append((b, a))
    edge_index = jnp.asarray(np.array(edges, dtype=np.int32).T)   # (2, 32)

    a_norm = gcn_norm_dense(edge_index, NUM_NODES)                # (N, N) f32
    p_mean = mean_pool_matrix(batch, NUM_GRAPHS)                  # (B, N) f32

    # Parameters (deterministic, synthetic init), unpadded "PyTorch" layout.
    conv_params = [
        init_fastkan_params(k_l0, NUM_FEATURES, HIDDEN_DIM, GRID_SIZE),
        init_fastkan_params(k_l1, HIDDEN_DIM, HIDDEN_DIM, GRID_SIZE),
    ]
    gcn_biases = [
        0.02 * jax.random.normal(kb0, (HIDDEN_DIM,), jnp.float32),
        0.02 * jax.random.normal(kb1, (HIDDEN_DIM,), jnp.float32),
    ]
    ro_params = init_fastkan_params(k_ro, HIDDEN_DIM, NUM_CLASSES, GRID_SIZE)

    # Pack into the padded, lane-dense kernel layout.
    layer_dims = [(NUM_FEATURES, HIDDEN_DIM), (HIDDEN_DIM, HIDDEN_DIM)]
    conv_packed = pack_conv_layers(conv_params, gcn_biases, layer_dims)
    ro_packed = pack_fastkan(ro_params, HIDDEN_DIM, NUM_CLASSES)

    x_pad = _pad2(x, NUM_NODES, _pad_cols(NUM_FEATURES))          # (16, 128) f32
    a_bf = a_norm.astype(jnp.bfloat16)                            # pre-cast MXU operand
    p_bf = _pad2(p_mean, _pad_rows(NUM_GRAPHS), NUM_NODES,
                 jnp.bfloat16)                                    # (8, 16) bf16, padded rows = 0

    fwd = jax.jit(lambda a_, p_, xp_, cp_, rp_: fastkagcn_forward(
        a_, p_, xp_, cp_, rp_,
        conv_d_ins=(NUM_FEATURES, HIDDEN_DIM),
        ro_d_in=HIDDEN_DIM,
        num_classes=NUM_CLASSES,
        grid_vals=tuple(float(v) for v in grid_vals),
        inv_denom=1.0 / float(denom)))

    out_pad = jax.block_until_ready(fwd(a_bf, p_bf, x_pad, conv_packed, ro_packed))
    out = jnp.asarray(out_pad)[:NUM_GRAPHS, :NUM_CLASSES]
    assert out.shape == (NUM_GRAPHS, NUM_CLASSES)

    # Correctness: matched reference (same math incl. bf16-at-MXU rounding).
    ref_match = ref_forward(x, a_norm, p_mean, conv_params, gcn_biases, ro_params,
                            grid_vals, denom, mm_bf16)
    np.testing.assert_allclose(np.asarray(out), np.asarray(ref_match),
                               rtol=5e-3, atol=5e-3)

    # Loose sanity bound vs. full-f32 semantics (only bf16 operand rounding differs).
    ref_f32 = ref_forward(x, a_norm, p_mean, conv_params, gcn_biases, ro_params,
                          grid_vals, denom, mm_f32)
    max_dev = float(jnp.max(jnp.abs(out - ref_f32)))
    assert max_dev < 0.5, f"bf16 MXU-operand rounding deviated too far: {max_dev}"

    print("KERNEL_OK")
</pallas_src>

<mosaic_0001>
module attributes {stable_mosaic.version = 11 : i64} {
  func.func @kernel(%arg0: memref<16x16xbf16, #tpu.memory_space<vmem>>, %arg1: memref<8x16xbf16, #tpu.memory_space<vmem>>, %arg2: memref<16x128xf32, #tpu.memory_space<vmem>>, %arg3: memref<2x1x128xf32, #tpu.memory_space<vmem>>, %arg4: memref<2x1x128xf32, #tpu.memory_space<vmem>>, %arg5: memref<2x640x128xbf16, #tpu.memory_space<vmem>>, %arg6: memref<2x1x128xf32, #tpu.memory_space<vmem>>, %arg7: memref<2x1x128xf32, #tpu.memory_space<vmem>>, %arg8: memref<1x128xf32, #tpu.memory_space<vmem>>, %arg9: memref<1x128xf32, #tpu.memory_space<vmem>>, %arg10: memref<640x128xbf16, #tpu.memory_space<vmem>>, %arg11: memref<1x128xf32, #tpu.memory_space<vmem>>, %arg12: memref<8x128xf32, #tpu.memory_space<vmem>>) attributes {dimension_semantics = [], scalar_prefetch = 0 : i64, scratch_operands = 0 : i64, tpu.core_type = #tpu.core_type<tc>} {
    %c0 = arith.constant 0 : index
    %c0_0 = arith.constant 0 : index
    %0 = vector.load %arg2[%c0, %c0_0] : memref<16x128xf32, #tpu.memory_space<vmem>>, vector<16x128xf32>
    %c0_1 = arith.constant 0 : index
    %c0_2 = arith.constant 0 : index
    %1 = vector.load %arg0[%c0_1, %c0_2] : memref<16x16xbf16, #tpu.memory_space<vmem>>, vector<16x16xbf16>
    %c0_3 = arith.constant 0 : index
    %c0_4 = arith.constant 0 : index
    %c0_5 = arith.constant 0 : index
    %2 = vector.load %arg3[%c0_3, %c0_4, %c0_5] : memref<2x1x128xf32, #tpu.memory_space<vmem>>, vector<1x1x128xf32>
    %3 = vector.shape_cast %2 : vector<1x1x128xf32> to vector<1x128xf32>
    %c0_6 = arith.constant 0 : index
    %c0_7 = arith.constant 0 : index
    %c0_8 = arith.constant 0 : index
    %4 = vector.load %arg4[%c0_6, %c0_7, %c0_8] : memref<2x1x128xf32, #tpu.memory_space<vmem>>, vector<1x1x128xf32>
    %5 = vector.shape_cast %4 : vector<1x1x128xf32> to vector<1x128xf32>
    %c0_9 = arith.constant 0 : index
    %c0_10 = arith.constant 0 : index
    %c0_11 = arith.constant 0 : index
    %6 = vector.load %arg5[%c0_9, %c0_10, %c0_11] : memref<2x640x128xbf16, #tpu.memory_space<vmem>>, vector<1x640x128xbf16>
    %7 = vector.shape_cast %6 : vector<1x640x128xbf16> to vector<640x128xbf16>
    %c0_12 = arith.constant 0 : index
    %c0_13 = arith.constant 0 : index
    %c0_14 = arith.constant 0 : index
    %8 = vector.load %arg6[%c0_12, %c0_13, %c0_14] : memref<2x1x128xf32, #tpu.memory_space<vmem>>, vector<1x1x128xf32>
    %9 = vector.shape_cast %8 : vector<1x1x128xf32> to vector<1x128xf32>
    %10 = tpu.iota {dimensions = array<i32: 1>} : vector<16x128xi32>
    %c8_i32 = arith.constant 8 : i32
    %11 = vector.broadcast %c8_i32 : i32 to vector<16x128xi32>
    %12 = arith.cmpi slt, %10, %11 : vector<16x128xi32>
    %13 = arith.extui %12 : vector<16x128xi1> to vector<16x128xi32>
    %14 = arith.sitofp %13 : vector<16x128xi32> to vector<16x128xf32>
    %cst = arith.constant dense<0.000000e+00> : vector<16xf32>
    %15 = vector.multi_reduction <add>, %0, %cst [1] : vector<16x128xf32> to vector<16xf32>
    %16 = vector.shape_cast %15 : vector<16xf32> to vector<16x1xf32>
    %cst_15 = arith.constant 1.250000e-01 : f32
    %17 = vector.broadcast %cst_15 : f32 to vector<16x1xf32>
    %18 = arith.mulf %16, %17 : vector<16x1xf32>
    %19 = vector.broadcast %18 : vector<16x1xf32> to vector<16x128xf32>
    %20 = arith.subf %0, %19 : vector<16x128xf32>
    %21 = arith.mulf %20, %14 : vector<16x128xf32>
    %22 = arith.mulf %21, %21 : vector<16x128xf32>
    %cst_16 = arith.constant dense<0.000000e+00> : vector<16xf32>
    %23 = vector.multi_reduction <add>, %22, %cst_16 [1] : vector<16x128xf32> to vector<16xf32>
    %24 = vector.shape_cast %23 : vector<16xf32> to vector<16x1xf32>
    %cst_17 = arith.constant 1.250000e-01 : f32
    %25 = vector.broadcast %cst_17 : f32 to vector<16x1xf32>
    %26 = arith.mulf %24, %25 : vector<16x1xf32>
    %cst_18 = arith.constant 9.99999974E-6 : f32
    %27 = vector.broadcast %cst_18 : f32 to vector<16x1xf32>
    %28 = arith.addf %26, %27 : vector<16x1xf32>
    %29 = math.rsqrt %28 : vector<16x1xf32>
    %30 = vector.broadcast %29 : vector<16x1xf32> to vector<16x128xf32>
    %31 = arith.mulf %21, %30 : vector<16x128xf32>
    %32 = vector.broadcast %3 : vector<1x128xf32> to vector<16x128xf32>
    %33 = arith.mulf %31, %32 : vector<16x128xf32>
    %34 = vector.broadcast %5 : vector<1x128xf32> to vector<16x128xf32>
    %35 = arith.addf %33, %34 : vector<16x128xf32>
    %cst_19 = arith.constant -2.000000e+00 : f32
    %36 = vector.broadcast %cst_19 : f32 to vector<16x128xf32>
    %37 = arith.subf %35, %36 : vector<16x128xf32>
    %cst_20 = arith.constant 7.500000e-01 : f32
    %38 = vector.broadcast %cst_20 : f32 to vector<16x128xf32>
    %39 = arith.mulf %37, %38 : vector<16x128xf32>
    %40 = arith.mulf %39, %39 : vector<16x128xf32>
    %cst_21 = arith.constant 0.000000e+00 : f32
    %41 = vector.broadcast %cst_21 : f32 to vector<16x128xf32>
    %42 = arith.subf %41, %40 : vector<16x128xf32>
    %43 = math.exp %42 : vector<16x128xf32>
    %44 = arith.truncf %43 : vector<16x128xf32> to vector<16x128xbf16>
    %cst_22 = arith.constant -0.666666686 : f32
    %45 = vector.broadcast %cst_22 : f32 to vector<16x128xf32>
    %46 = arith.subf %35, %45 : vector<16x128xf32>
    %cst_23 = arith.constant 7.500000e-01 : f32
    %47 = vector.broadcast %cst_23 : f32 to vector<16x128xf32>
    %48 = arith.mulf %46, %47 : vector<16x128xf32>
    %49 = arith.mulf %48, %48 : vector<16x128xf32>
    %cst_24 = arith.constant 0.000000e+00 : f32
    %50 = vector.broadcast %cst_24 : f32 to vector<16x128xf32>
    %51 = arith.subf %50, %49 : vector<16x128xf32>
    %52 = math.exp %51 : vector<16x128xf32>
    %53 = arith.truncf %52 : vector<16x128xf32> to vector<16x128xbf16>
    %cst_25 = arith.constant 0.666666686 : f32
    %54 = vector.broadcast %cst_25 : f32 to vector<16x128xf32>
    %55 = arith.subf %35, %54 : vector<16x128xf32>
    %cst_26 = arith.constant 7.500000e-01 : f32
    %56 = vector.broadcast %cst_26 : f32 to vector<16x128xf32>
    %57 = arith.mulf %55, %56 : vector<16x128xf32>
    %58 = arith.mulf %57, %57 : vector<16x128xf32>
    %cst_27 = arith.constant 0.000000e+00 : f32
    %59 = vector.broadcast %cst_27 : f32 to vector<16x128xf32>
    %60 = arith.subf %59, %58 : vector<16x128xf32>
    %61 = math.exp %60 : vector<16x128xf32>
    %62 = arith.truncf %61 : vector<16x128xf32> to vector<16x128xbf16>
    %cst_28 = arith.constant 2.000000e+00 : f32
    %63 = vector.broadcast %cst_28 : f32 to vector<16x128xf32>
    %64 = arith.subf %35, %63 : vector<16x128xf32>
    %cst_29 = arith.constant 7.500000e-01 : f32
    %65 = vector.broadcast %cst_29 : f32 to vector<16x128xf32>
    %66 = arith.mulf %64, %65 : vector<16x128xf32>
    %67 = arith.mulf %66, %66 : vector<16x128xf32>
    %cst_30 = arith.constant 0.000000e+00 : f32
    %68 = vector.broadcast %cst_30 : f32 to vector<16x128xf32>
    %69 = arith.subf %68, %67 : vector<16x128xf32>
    %70 = math.exp %69 : vector<16x128xf32>
    %71 = arith.truncf %70 : vector<16x128xf32> to vector<16x128xbf16>
    %72 = arith.negf %0 : vector<16x128xf32>
    %73 = math.exp %72 : vector<16x128xf32>
    %cst_31 = arith.constant 1.000000e+00 : f32
    %74 = vector.broadcast %cst_31 : f32 to vector<16x128xf32>
    %75 = arith.addf %74, %73 : vector<16x128xf32>
    %76 = arith.divf %74, %75 : vector<16x128xf32>
    %77 = arith.mulf %0, %76 : vector<16x128xf32>
    %78 = arith.truncf %77 : vector<16x128xf32> to vector<16x128xbf16>
    %79 = tpu.concatenate %44, %53, %62, %71, %78 in 1 : vector<16x128xbf16>, vector<16x128xbf16>, vector<16x128xbf16>, vector<16x128xbf16>, vector<16x128xbf16> -> vector<16x640xbf16>
    %cst_32 = arith.constant dense<0.000000e+00> : vector<16x128xf32>
    %80 = tpu.matmul %79, %7, %cst_32 {dimension_numbers = #tpu.dot_dimension_numbers<[1], [0], [0], [1], [0, 0, 1, 1], [], []>} : vector<16x640xbf16>, vector<640x128xbf16>, vector<16x128xf32> -> vector<16x128xf32>
    %81 = vector.broadcast %9 : vector<1x128xf32> to vector<16x128xf32>
    %82 = arith.addf %80, %81 : vector<16x128xf32>
    %83 = arith.truncf %82 : vector<16x128xf32> to vector<16x128xbf16>
    %cst_33 = arith.constant dense<0.000000e+00> : vector<16x128xf32>
    %84 = tpu.matmul %1, %83, %cst_33 {dimension_numbers = #tpu.dot_dimension_numbers<[1], [0], [0], [1], [0, 0, 1, 1], [], []>} : vector<16x16xbf16>, vector<16x128xbf16>, vector<16x128xf32> -> vector<16x128xf32>
    %c0_34 = arith.constant 0 : index
    %c0_35 = arith.constant 0 : index
    %c0_36 = arith.constant 0 : index
    %85 = vector.load %arg7[%c0_34, %c0_35, %c0_36] : memref<2x1x128xf32, #tpu.memory_space<vmem>>, vector<1x1x128xf32>
    %86 = vector.shape_cast %85 : vector<1x1x128xf32> to vector<1x128xf32>
    %87 = vector.broadcast %86 : vector<1x128xf32> to vector<16x128xf32>
    %88 = arith.addf %84, %87 : vector<16x128xf32>
    %89 = arith.negf %88 : vector<16x128xf32>
    %90 = math.exp %89 : vector<16x128xf32>
    %cst_37 = arith.constant 1.000000e+00 : f32
    %91 = vector.broadcast %cst_37 : f32 to vector<16x128xf32>
    %92 = arith.addf %91, %90 : vector<16x128xf32>
    %93 = arith.divf %91, %92 : vector<16x128xf32>
    %94 = arith.mulf %88, %93 : vector<16x128xf32>
    %c1 = arith.constant 1 : index
    %c0_38 = arith.constant 0 : index
    %c0_39 = arith.constant 0 : index
    %95 = vector.load %arg3[%c1, %c0_38, %c0_39] : memref<2x1x128xf32, #tpu.memory_space<vmem>>, vector<1x1x128xf32>
    %96 = vector.shape_cast %95 : vector<1x1x128xf32> to vector<1x128xf32>
    %c1_40 = arith.constant 1 : index
    %c0_41 = arith.constant 0 : index
    %c0_42 = arith.constant 0 : index
    %97 = vector.load %arg4[%c1_40, %c0_41, %c0_42] : memref<2x1x128xf32, #tpu.memory_space<vmem>>, vector<1x1x128xf32>
    %98 = vector.shape_cast %97 : vector<1x1x128xf32> to vector<1x128xf32>
    %c1_43 = arith.constant 1 : index
    %c0_44 = arith.constant 0 : index
    %c0_45 = arith.constant 0 : index
    %99 = vector.load %arg5[%c1_43, %c0_44, %c0_45] : memref<2x640x128xbf16, #tpu.memory_space<vmem>>, vector<1x640x128xbf16>
    %100 = vector.shape_cast %99 : vector<1x640x128xbf16> to vector<640x128xbf16>
    %c1_46 = arith.constant 1 : index
    %c0_47 = arith.constant 0 : index
    %c0_48 = arith.constant 0 : index
    %101 = vector.load %arg6[%c1_46, %c0_47, %c0_48] : memref<2x1x128xf32, #tpu.memory_space<vmem>>, vector<1x1x128xf32>
    %102 = vector.shape_cast %101 : vector<1x1x128xf32> to vector<1x128xf32>
    %103 = tpu.iota {dimensions = array<i32: 1>} : vector<16x128xi32>
    %c32_i32 = arith.constant 32 : i32
    %104 = vector.broadcast %c32_i32 : i32 to vector<16x128xi32>
    %105 = arith.cmpi slt, %103, %104 : vector<16x128xi32>
    %106 = arith.extui %105 : vector<16x128xi1> to vector<16x128xi32>
    %107 = arith.sitofp %106 : vector<16x128xi32> to vector<16x128xf32>
    %cst_49 = arith.constant dense<0.000000e+00> : vector<16xf32>
    %108 = vector.multi_reduction <add>, %94, %cst_49 [1] : vector<16x128xf32> to vector<16xf32>
    %109 = vector.shape_cast %108 : vector<16xf32> to vector<16x1xf32>
    %cst_50 = arith.constant 3.125000e-02 : f32
    %110 = vector.broadcast %cst_50 : f32 to vector<16x1xf32>
    %111 = arith.mulf %109, %110 : vector<16x1xf32>
    %112 = vector.broadcast %111 : vector<16x1xf32> to vector<16x128xf32>
    %113 = arith.subf %94, %112 : vector<16x128xf32>
    %114 = arith.mulf %113, %107 : vector<16x128xf32>
    %115 = arith.mulf %114, %114 : vector<16x128xf32>
    %cst_51 = arith.constant dense<0.000000e+00> : vector<16xf32>
    %116 = vector.multi_reduction <add>, %115, %cst_51 [1] : vector<16x128xf32> to vector<16xf32>
    %117 = vector.shape_cast %116 : vector<16xf32> to vector<16x1xf32>
    %cst_52 = arith.constant 3.125000e-02 : f32
    %118 = vector.broadcast %cst_52 : f32 to vector<16x1xf32>
    %119 = arith.mulf %117, %118 : vector<16x1xf32>
    %cst_53 = arith.constant 9.99999974E-6 : f32
    %120 = vector.broadcast %cst_53 : f32 to vector<16x1xf32>
    %121 = arith.addf %119, %120 : vector<16x1xf32>
    %122 = math.rsqrt %121 : vector<16x1xf32>
    %123 = vector.broadcast %122 : vector<16x1xf32> to vector<16x128xf32>
    %124 = arith.mulf %114, %123 : vector<16x128xf32>
    %125 = vector.broadcast %96 : vector<1x128xf32> to vector<16x128xf32>
    %126 = arith.mulf %124, %125 : vector<16x128xf32>
    %127 = vector.broadcast %98 : vector<1x128xf32> to vector<16x128xf32>
    %128 = arith.addf %126, %127 : vector<16x128xf32>
    %cst_54 = arith.constant -2.000000e+00 : f32
    %129 = vector.broadcast %cst_54 : f32 to vector<16x128xf32>
    %130 = arith.subf %128, %129 : vector<16x128xf32>
    %cst_55 = arith.constant 7.500000e-01 : f32
    %131 = vector.broadcast %cst_55 : f32 to vector<16x128xf32>
    %132 = arith.mulf %130, %131 : vector<16x128xf32>
    %133 = arith.mulf %132, %132 : vector<16x128xf32>
    %cst_56 = arith.constant 0.000000e+00 : f32
    %134 = vector.broadcast %cst_56 : f32 to vector<16x128xf32>
    %135 = arith.subf %134, %133 : vector<16x128xf32>
    %136 = math.exp %135 : vector<16x128xf32>
    %137 = arith.truncf %136 : vector<16x128xf32> to vector<16x128xbf16>
    %cst_57 = arith.constant -0.666666686 : f32
    %138 = vector.broadcast %cst_57 : f32 to vector<16x128xf32>
    %139 = arith.subf %128, %138 : vector<16x128xf32>
    %cst_58 = arith.constant 7.500000e-01 : f32
    %140 = vector.broadcast %cst_58 : f32 to vector<16x128xf32>
    %141 = arith.mulf %139, %140 : vector<16x128xf32>
    %142 = arith.mulf %141, %141 : vector<16x128xf32>
    %cst_59 = arith.constant 0.000000e+00 : f32
    %143 = vector.broadcast %cst_59 : f32 to vector<16x128xf32>
    %144 = arith.subf %143, %142 : vector<16x128xf32>
    %145 = math.exp %144 : vector<16x128xf32>
    %146 = arith.truncf %145 : vector<16x128xf32> to vector<16x128xbf16>
    %cst_60 = arith.constant 0.666666686 : f32
    %147 = vector.broadcast %cst_60 : f32 to vector<16x128xf32>
    %148 = arith.subf %128, %147 : vector<16x128xf32>
    %cst_61 = arith.constant 7.500000e-01 : f32
    %149 = vector.broadcast %cst_61 : f32 to vector<16x128xf32>
    %150 = arith.mulf %148, %149 : vector<16x128xf32>
    %151 = arith.mulf %150, %150 : vector<16x128xf32>
    %cst_62 = arith.constant 0.000000e+00 : f32
    %152 = vector.broadcast %cst_62 : f32 to vector<16x128xf32>
    %153 = arith.subf %152, %151 : vector<16x128xf32>
    %154 = math.exp %153 : vector<16x128xf32>
    %155 = arith.truncf %154 : vector<16x128xf32> to vector<16x128xbf16>
    %cst_63 = arith.constant 2.000000e+00 : f32
    %156 = vector.broadcast %cst_63 : f32 to vector<16x128xf32>
    %157 = arith.subf %128, %156 : vector<16x128xf32>
    %cst_64 = arith.constant 7.500000e-01 : f32
    %158 = vector.broadcast %cst_64 : f32 to vector<16x128xf32>
    %159 = arith.mulf %157, %158 : vector<16x128xf32>
    %160 = arith.mulf %159, %159 : vector<16x128xf32>
    %cst_65 = arith.constant 0.000000e+00 : f32
    %161 = vector.broadcast %cst_65 : f32 to vector<16x128xf32>
    %162 = arith.subf %161, %160 : vector<16x128xf32>
    %163 = math.exp %162 : vector<16x128xf32>
    %164 = arith.truncf %163 : vector<16x128xf32> to vector<16x128xbf16>
    %165 = arith.negf %94 : vector<16x128xf32>
    %166 = math.exp %165 : vector<16x128xf32>
    %cst_66 = arith.constant 1.000000e+00 : f32
    %167 = vector.broadcast %cst_66 : f32 to vector<16x128xf32>
    %168 = arith.addf %167, %166 : vector<16x128xf32>
    %169 = arith.divf %167, %168 : vector<16x128xf32>
    %170 = arith.mulf %94, %169 : vector<16x128xf32>
    %171 = arith.truncf %170 : vector<16x128xf32> to vector<16x128xbf16>
    %172 = tpu.concatenate %137, %146, %155, %164, %171 in 1 : vector<16x128xbf16>, vector<16x128xbf16>, vector<16x128xbf16>, vector<16x128xbf16>, vector<16x128xbf16> -> vector<16x640xbf16>
    %cst_67 = arith.constant dense<0.000000e+00> : vector<16x128xf32>
    %173 = tpu.matmul %172, %100, %cst_67 {dimension_numbers = #tpu.dot_dimension_numbers<[1], [0], [0], [1], [0, 0, 1, 1], [], []>} : vector<16x640xbf16>, vector<640x128xbf16>, vector<16x128xf32> -> vector<16x128xf32>
    %174 = vector.broadcast %102 : vector<1x128xf32> to vector<16x128xf32>
    %175 = arith.addf %173, %174 : vector<16x128xf32>
    %176 = arith.truncf %175 : vector<16x128xf32> to vector<16x128xbf16>
    %cst_68 = arith.constant dense<0.000000e+00> : vector<16x128xf32>
    %177 = tpu.matmul %1, %176, %cst_68 {dimension_numbers = #tpu.dot_dimension_numbers<[1], [0], [0], [1], [0, 0, 1, 1], [], []>} : vector<16x16xbf16>, vector<16x128xbf16>, vector<16x128xf32> -> vector<16x128xf32>
    %c1_69 = arith.constant 1 : index
    %c0_70 = arith.constant 0 : index
    %c0_71 = arith.constant 0 : index
    %178 = vector.load %arg7[%c1_69, %c0_70, %c0_71] : memref<2x1x128xf32, #tpu.memory_space<vmem>>, vector<1x1x128xf32>
    %179 = vector.shape_cast %178 : vector<1x1x128xf32> to vector<1x128xf32>
    %180 = vector.broadcast %179 : vector<1x128xf32> to vector<16x128xf32>
    %181 = arith.addf %177, %180 : vector<16x128xf32>
    %182 = arith.negf %181 : vector<16x128xf32>
    %183 = math.exp %182 : vector<16x128xf32>
    %cst_72 = arith.constant 1.000000e+00 : f32
    %184 = vector.broadcast %cst_72 : f32 to vector<16x128xf32>
    %185 = arith.addf %184, %183 : vector<16x128xf32>
    %186 = arith.divf %184, %185 : vector<16x128xf32>
    %187 = arith.mulf %181, %186 : vector<16x128xf32>
    %c0_73 = arith.constant 0 : index
    %c0_74 = arith.constant 0 : index
    %188 = vector.load %arg1[%c0_73, %c0_74] : memref<8x16xbf16, #tpu.memory_space<vmem>>, vector<8x16xbf16>
    %189 = arith.truncf %187 : vector<16x128xf32> to vector<16x128xbf16>
    %cst_75 = arith.constant dense<0.000000e+00> : vector<8x128xf32>
    %190 = tpu.matmul %188, %189, %cst_75 {dimension_numbers = #tpu.dot_dimension_numbers<[1], [0], [0], [1], [0, 0, 1, 1], [], []>} : vector<8x16xbf16>, vector<16x128xbf16>, vector<8x128xf32> -> vector<8x128xf32>
    %c0_76 = arith.constant 0 : index
    %c0_77 = arith.constant 0 : index
    %191 = vector.load %arg8[%c0_76, %c0_77] : memref<1x128xf32, #tpu.memory_space<vmem>>, vector<1x128xf32>
    %c0_78 = arith.constant 0 : index
    %c0_79 = arith.constant 0 : index
    %192 = vector.load %arg9[%c0_78, %c0_79] : memref<1x128xf32, #tpu.memory_space<vmem>>, vector<1x128xf32>
    %c0_80 = arith.constant 0 : index
    %c0_81 = arith.constant 0 : index
    %193 = vector.load %arg10[%c0_80, %c0_81] : memref<640x128xbf16, #tpu.memory_space<vmem>>, vector<640x128xbf16>
    %c0_82 = arith.constant 0 : index
    %c0_83 = arith.constant 0 : index
    %194 = vector.load %arg11[%c0_82, %c0_83] : memref<1x128xf32, #tpu.memory_space<vmem>>, vector<1x128xf32>
    %195 = tpu.iota {dimensions = array<i32: 1>} : vector<8x128xi32>
    %c32_i32_84 = arith.constant 32 : i32
    %196 = vector.broadcast %c32_i32_84 : i32 to vector<8x128xi32>
    %197 = arith.cmpi slt, %195, %196 : vector<8x128xi32>
    %198 = arith.extui %197 : vector<8x128xi1> to vector<8x128xi32>
    %199 = arith.sitofp %198 : vector<8x128xi32> to vector<8x128xf32>
    %cst_85 = arith.constant dense<0.000000e+00> : vector<8xf32>
    %200 = vector.multi_reduction <add>, %190, %cst_85 [1] : vector<8x128xf32> to vector<8xf32>
    %201 = vector.shape_cast %200 : vector<8xf32> to vector<8x1xf32>
    %cst_86 = arith.constant 3.125000e-02 : f32
    %202 = vector.broadcast %cst_86 : f32 to vector<8x1xf32>
    %203 = arith.mulf %201, %202 : vector<8x1xf32>
    %204 = vector.broadcast %203 : vector<8x1xf32> to vector<8x128xf32>
    %205 = arith.subf %190, %204 : vector<8x128xf32>
    %206 = arith.mulf %205, %199 : vector<8x128xf32>
    %207 = arith.mulf %206, %206 : vector<8x128xf32>
    %cst_87 = arith.constant dense<0.000000e+00> : vector<8xf32>
    %208 = vector.multi_reduction <add>, %207, %cst_87 [1] : vector<8x128xf32> to vector<8xf32>
    %209 = vector.shape_cast %208 : vector<8xf32> to vector<8x1xf32>
    %cst_88 = arith.constant 3.125000e-02 : f32
    %210 = vector.broadcast %cst_88 : f32 to vector<8x1xf32>
    %211 = arith.mulf %209, %210 : vector<8x1xf32>
    %cst_89 = arith.constant 9.99999974E-6 : f32
    %212 = vector.broadcast %cst_89 : f32 to vector<8x1xf32>
    %213 = arith.addf %211, %212 : vector<8x1xf32>
    %214 = math.rsqrt %213 : vector<8x1xf32>
    %215 = vector.broadcast %214 : vector<8x1xf32> to vector<8x128xf32>
    %216 = arith.mulf %206, %215 : vector<8x128xf32>
    %217 = vector.broadcast %191 : vector<1x128xf32> to vector<8x128xf32>
    %218 = arith.mulf %216, %217 : vector<8x128xf32>
    %219 = vector.broadcast %192 : vector<1x128xf32> to vector<8x128xf32>
    %220 = arith.addf %218, %219 : vector<8x128xf32>
    %cst_90 = arith.constant -2.000000e+00 : f32
    %221 = vector.broadcast %cst_90 : f32 to vector<8x128xf32>
    %222 = arith.subf %220, %221 : vector<8x128xf32>
    %cst_91 = arith.constant 7.500000e-01 : f32
    %223 = vector.broadcast %cst_91 : f32 to vector<8x128xf32>
    %224 = arith.mulf %222, %223 : vector<8x128xf32>
    %225 = arith.mulf %224, %224 : vector<8x128xf32>
    %cst_92 = arith.constant 0.000000e+00 : f32
    %226 = vector.broadcast %cst_92 : f32 to vector<8x128xf32>
    %227 = arith.subf %226, %225 : vector<8x128xf32>
    %228 = math.exp %227 : vector<8x128xf32>
    %229 = arith.truncf %228 : vector<8x128xf32> to vector<8x128xbf16>
    %cst_93 = arith.constant -0.666666686 : f32
    %230 = vector.broadcast %cst_93 : f32 to vector<8x128xf32>
    %231 = arith.subf %220, %230 : vector<8x128xf32>
    %cst_94 = arith.constant 7.500000e-01 : f32
    %232 = vector.broadcast %cst_94 : f32 to vector<8x128xf32>
    %233 = arith.mulf %231, %232 : vector<8x128xf32>
    %234 = arith.mulf %233, %233 : vector<8x128xf32>
    %cst_95 = arith.constant 0.000000e+00 : f32
    %235 = vector.broadcast %cst_95 : f32 to vector<8x128xf32>
    %236 = arith.subf %235, %234 : vector<8x128xf32>
    %237 = math.exp %236 : vector<8x128xf32>
    %238 = arith.truncf %237 : vector<8x128xf32> to vector<8x128xbf16>
    %cst_96 = arith.constant 0.666666686 : f32
    %239 = vector.broadcast %cst_96 : f32 to vector<8x128xf32>
    %240 = arith.subf %220, %239 : vector<8x128xf32>
    %cst_97 = arith.constant 7.500000e-01 : f32
    %241 = vector.broadcast %cst_97 : f32 to vector<8x128xf32>
    %242 = arith.mulf %240, %241 : vector<8x128xf32>
    %243 = arith.mulf %242, %242 : vector<8x128xf32>
    %cst_98 = arith.constant 0.000000e+00 : f32
    %244 = vector.broadcast %cst_98 : f32 to vector<8x128xf32>
    %245 = arith.subf %244, %243 : vector<8x128xf32>
    %246 = math.exp %245 : vector<8x128xf32>
    %247 = arith.truncf %246 : vector<8x128xf32> to vector<8x128xbf16>
    %cst_99 = arith.constant 2.000000e+00 : f32
    %248 = vector.broadcast %cst_99 : f32 to vector<8x128xf32>
    %249 = arith.subf %220, %248 : vector<8x128xf32>
    %cst_100 = arith.constant 7.500000e-01 : f32
    %250 = vector.broadcast %cst_100 : f32 to vector<8x128xf32>
    %251 = arith.mulf %249, %250 : vector<8x128xf32>
    %252 = arith.mulf %251, %251 : vector<8x128xf32>
    %cst_101 = arith.constant 0.000000e+00 : f32
    %253 = vector.broadcast %cst_101 : f32 to vector<8x128xf32>
    %254 = arith.subf %253, %252 : vector<8x128xf32>
    %255 = math.exp %254 : vector<8x128xf32>
    %256 = arith.truncf %255 : vector<8x128xf32> to vector<8x128xbf16>
    %257 = arith.negf %190 : vector<8x128xf32>
    %258 = math.exp %257 : vector<8x128xf32>
    %cst_102 = arith.constant 1.000000e+00 : f32
    %259 = vector.broadcast %cst_102 : f32 to vector<8x128xf32>
    %260 = arith.addf %259, %258 : vector<8x128xf32>
    %261 = arith.divf %259, %260 : vector<8x128xf32>
    %262 = arith.mulf %190, %261 : vector<8x128xf32>
    %263 = arith.truncf %262 : vector<8x128xf32> to vector<8x128xbf16>
    %264 = tpu.concatenate %229, %238, %247, %256, %263 in 1 : vector<8x128xbf16>, vector<8x128xbf16>, vector<8x128xbf16>, vector<8x128xbf16>, vector<8x128xbf16> -> vector<8x640xbf16>
    %cst_103 = arith.constant dense<0.000000e+00> : vector<8x128xf32>
    %265 = tpu.matmul %264, %193, %cst_103 {dimension_numbers = #tpu.dot_dimension_numbers<[1], [0], [0], [1], [0, 0, 1, 1], [], []>} : vector<8x640xbf16>, vector<640x128xbf16>, vector<8x128xf32> -> vector<8x128xf32>
    %266 = vector.broadcast %194 : vector<1x128xf32> to vector<8x128xf32>
    %267 = arith.addf %265, %266 : vector<8x128xf32>
    %268 = tpu.iota {dimensions = array<i32: 1>} : vector<8x128xi32>
    %c4_i32 = arith.constant 4 : i32
    %269 = vector.broadcast %c4_i32 : i32 to vector<8x128xi32>
    %270 = arith.cmpi slt, %268, %269 : vector<8x128xi32>
    %cst_104 = arith.constant -1.000000e+30 : f32
    %271 = vector.broadcast %cst_104 : f32 to vector<8x128xf32>
    %272 = arith.select %270, %267, %271 : vector<8x128xi1>, vector<8x128xf32>
    %cst_105 = arith.constant dense<0xFF800000> : vector<8xf32>
    %273 = vector.multi_reduction <maximumf>, %272, %cst_105 [1] : vector<8x128xf32> to vector<8xf32>
    %274 = vector.shape_cast %273 : vector<8xf32> to vector<8x1xf32>
    %275 = vector.broadcast %274 : vector<8x1xf32> to vector<8x128xf32>
    %276 = arith.subf %267, %275 : vector<8x128xf32>
    %277 = math.exp %276 : vector<8x128xf32>
    %cst_106 = arith.constant 0.000000e+00 : f32
    %278 = vector.broadcast %cst_106 : f32 to vector<8x128xf32>
    %279 = arith.select %270, %277, %278 : vector<8x128xi1>, vector<8x128xf32>
    %cst_107 = arith.constant dense<0.000000e+00> : vector<8xf32>
    %280 = vector.multi_reduction <add>, %279, %cst_107 [1] : vector<8x128xf32> to vector<8xf32>
    %281 = vector.shape_cast %280 : vector<8xf32> to vector<8x1xf32>
    %282 = math.log %281 : vector<8x1xf32>
    %283 = vector.broadcast %282 : vector<8x1xf32> to vector<8x128xf32>
    %284 = arith.subf %276, %283 : vector<8x128xf32>
    %c0_108 = arith.constant 0 : index
    %c0_109 = arith.constant 0 : index
    %285 = vector.load %arg12[%c0_108, %c0_109] : memref<8x128xf32, #tpu.memory_space<vmem>>, vector<8x128xf32>
    tpu.vector_store %arg12[%c0_108, %c0_109], %284 {strides = array<i32>} : memref<8x128xf32, #tpu.memory_space<vmem>>, vector<8x128xf32>,
    return
  }
}

</mosaic_0001>

<llo_original>
// kernel: _lambda_.1
$region0: #{_lambda_.1}
  #allocation0 [shape = 'u32[]', space=smem, size = 0x4, offset = 0x4, fixed_abs, tag = 'smem constant byte address 0x4 - core index']
  #allocation1 [shape = 'u32[144,128]{1,0:T(1,128)}', space=vmem, size = 0x12000, scoped, tag = 'internal scratch']
  %s0 = inlined_call_operand.hbm [shape: bf16[16,16], index: 0, kind: input, shape index: {}]
  %s1 = inlined_call_operand.hbm [shape: bf16[8,16], index: 1, kind: input, shape index: {}]
  %s2 = inlined_call_operand.hbm [shape: f32[16,128], index: 2, kind: input, shape index: {}]
  %s3 = inlined_call_operand.vmem [shape: f32[2,1,128], index: 3, kind: input, shape index: {}]
  %s4 = inlined_call_operand.vmem [shape: f32[2,1,128], index: 4, kind: input, shape index: {}]
  %s5 = inlined_call_operand.hbm [shape: bf16[2,640,128], index: 5, kind: input, shape index: {}]
  %s6 = inlined_call_operand.vmem [shape: f32[2,1,128], index: 6, kind: input, shape index: {}]
  %s7 = inlined_call_operand.vmem [shape: f32[2,1,128], index: 7, kind: input, shape index: {}]
  %s8 = inlined_call_operand.vmem [shape: f32[1,128], index: 8, kind: input, shape index: {}]
  %s9 = inlined_call_operand.vmem [shape: f32[1,128], index: 9, kind: input, shape index: {}]
  %s10 = inlined_call_operand.hbm [shape: bf16[640,128], index: 10, kind: input, shape index: {}]
  %s11 = inlined_call_operand.vmem [shape: f32[1,128], index: 11, kind: input, shape index: {}]
  %s12 = inlined_call_operand.hbm [shape: f32[8,128], index: 12, kind: output, shape index: {}]
  %s13 = sld [smem:[#allocation0]]
  $region78: #{_lambda_.1} parent=0
    _
  %s15 = ssub.s32 1, %s13
  %s16 = scalar_select 0, %s15, %s13
  $region1: #{_lambda_.1} parent=0
    #allocation2 [shape = 'u8[4096]{0}', space=vmem, size = 0x1000, scoped, tag = 'input window, operand 0, single buffered']
    #allocation3 [shape = 's32[1]{0}', space=sflag, size = 0x4, scoped, tag = 'scoped memory for _lambda_.1']
    #allocation4 [shape = 's32[1]{0}', space=sflag, size = 0x4, scoped, tag = 'scoped memory for _lambda_.1']
    #allocation5 [shape = 'u8[2048]{0}', space=vmem, size = 0x800, scoped, tag = 'input window, operand 1, single buffered']
    #allocation6 [shape = 's32[1]{0}', space=sflag, size = 0x4, scoped, tag = 'scoped memory for _lambda_.1']
    #allocation7 [shape = 'u8[8192]{0}', space=vmem, size = 0x2000, scoped, tag = 'input window, operand 2, single buffered']
    #allocation8 [shape = 'u8[327680]{0}', space=vmem, size = 0x50000, scoped, tag = 'input window, operand 5, single buffered']
    #allocation9 [shape = 's32[1]{0}', space=sflag, size = 0x4, scoped, tag = 'scoped memory for _lambda_.1']
    #allocation10 [shape = 'u8[163840]{0}', space=vmem, size = 0x28000, scoped, tag = 'input window, operand 10, single buffered']
    #allocation11 [shape = 'u8[4096]{0}', space=vmem, size = 0x1000, scoped, tag = 'output window, operand 0, single buffered']
    %17 = vsyncpa [#allocation3], 0
    %18 = vsyncpa [#allocation6], 0
    %19 = vsyncpa [#allocation9], 0
    %20 = vsyncpa [#allocation4], 0
    // Predicated region
    $region2: #{_lambda_.1} parent=1 // pred_check
      _
    $region3: #{_lambda_.1} parent=1 // pred_check_branch
      %22 = sbr.rel (0) target = $region5
    $region4: #{_lambda_.1} parent=1 // pred_region
      %s24 = ssub.s32 128, 128
      %25 = vsyncadd [#allocation3], %s24
      %s26 = sshll.u32 [#allocation2], 4
      %s27 = int_to_ptr.vmem [resolvable:$true] %s26
      %32 = dma.hbm_to_vmem [thread:$0]  %s0, 128, %s27, [#allocation3], 64, 64, 4
    $region5: #{_lambda_.1} parent=1 // pred_fallthru
      _
    // Predicated region
    $region6: #{_lambda_.1} parent=1 // pred_check
      _
    $region7: #{_lambda_.1} parent=1 // pred_check_branch
      %34 = sbr.rel (0) target = $region9
    $region8: #{_lambda_.1} parent=1 // pred_region
      %s36 = ssub.s32 64, 64
      %37 = vsyncadd [#allocation6], %s36
      %s39 = sshll.u32 [#allocation5], 4
      %s40 = int_to_ptr.vmem [resolvable:$true] %s39
      %42 = dma.hbm_to_vmem [thread:$0]  %s1, 64, %s40, [#allocation6]
    $region9: #{_lambda_.1} parent=1 // pred_fallthru
      _
    // Predicated region
    $region10: #{_lambda_.1} parent=1 // pred_check
      _
    $region11: #{_lambda_.1} parent=1 // pred_check_branch
      %44 = sbr.rel (0) target = $region13
    $region12: #{_lambda_.1} parent=1 // pred_region
      %s46 = ssub.s32 256, 256
      %47 = vsyncadd [#allocation6], %s46
      %s48 = sshll.u32 [#allocation7], 4
      %s49 = int_to_ptr.vmem [resolvable:$true] %s48
      %54 = dma.hbm_to_vmem [thread:$0]  %s2, 256, %s49, [#allocation6], 128, 128, 8
    $region13: #{_lambda_.1} parent=1 // pred_fallthru
      _
    // Predicated region
    $region14: #{_lambda_.1} parent=1 // pred_check
      _
    $region15: #{_lambda_.1} parent=1 // pred_check_branch
      %56 = sbr.rel (0) target = $region17
    $region16: #{_lambda_.1} parent=1 // pred_region
      _
    $region17: #{_lambda_.1} parent=1 // pred_fallthru
      _
    // Predicated region
    $region18: #{_lambda_.1} parent=1 // pred_check
      _
    $region19: #{_lambda_.1} parent=1 // pred_check_branch
      %58 = sbr.rel (0) target = $region21
    $region20: #{_lambda_.1} parent=1 // pred_region
      _
    $region21: #{_lambda_.1} parent=1 // pred_fallthru
      _
    // Predicated region
    $region22: #{_lambda_.1} parent=1 // pred_check
      _
    $region23: #{_lambda_.1} parent=1 // pred_check_branch
      %60 = sbr.rel (0) target = $region25
    $region24: #{_lambda_.1} parent=1 // pred_region
      %s62 = ssub.s32 10240, 10240
      %63 = vsyncadd [#allocation9], %s62
      %s64 = sshll.u32 [#allocation8], 4
      %s65 = int_to_ptr.vmem [resolvable:$true] %s64
      %70 = dma.hbm_to_vmem [thread:$0]  %s5, 10240, %s65, [#allocation9], 64, 64, 4
    $region25: #{_lambda_.1} parent=1 // pred_fallthru
      _
    // Predicated region
    $region26: #{_lambda_.1} parent=1 // pred_check
      _
    $region27: #{_lambda_.1} parent=1 // pred_check_branch
      %72 = sbr.rel (0) target = $region29
    $region28: #{_lambda_.1} parent=1 // pred_region
      _
    $region29: #{_lambda_.1} parent=1 // pred_fallthru
      _
    // Predicated region
    $region30: #{_lambda_.1} parent=1 // pred_check
      _
    $region31: #{_lambda_.1} parent=1 // pred_check_branch
      %74 = sbr.rel (0) target = $region33
    $region32: #{_lambda_.1} parent=1 // pred_region
      _
    $region33: #{_lambda_.1} parent=1 // pred_fallthru
      _
    // Predicated region
    $region34: #{_lambda_.1} parent=1 // pred_check
      _
    $region35: #{_lambda_.1} parent=1 // pred_check_branch
      %76 = sbr.rel (0) target = $region37
    $region36: #{_lambda_.1} parent=1 // pred_region
      _
    $region37: #{_lambda_.1} parent=1 // pred_fallthru
      _
    // Predicated region
    $region38: #{_lambda_.1} parent=1 // pred_check
      _
    $region39: #{_lambda_.1} parent=1 // pred_check_branch
      %78 = sbr.rel (0) target = $region41
    $region40: #{_lambda_.1} parent=1 // pred_region
      _
    $region41: #{_lambda_.1} parent=1 // pred_fallthru
      _
    // Predicated region
    $region42: #{_lambda_.1} parent=1 // pred_check
      _
    $region43: #{_lambda_.1} parent=1 // pred_check_branch
      %80 = sbr.rel (0) target = $region45
    $region44: #{_lambda_.1} parent=1 // pred_region
      %s82 = ssub.s32 5120, 5120
      %83 = vsyncadd [#allocation9], %s82
      %s84 = sshll.u32 [#allocation10], 4
      %s85 = int_to_ptr.vmem [resolvable:$true] %s84
      %90 = dma.hbm_to_vmem [thread:$0]  %s10, 5120, %s85, [#allocation9], 64, 64, 4
    $region45: #{_lambda_.1} parent=1 // pred_fallthru
      _
    // Predicated region
    $region46: #{_lambda_.1} parent=1 // pred_check
      _
    $region47: #{_lambda_.1} parent=1 // pred_check_branch
      %92 = sbr.rel (0) target = $region49
    $region48: #{_lambda_.1} parent=1 // pred_region
      _
    $region49: #{_lambda_.1} parent=1 // pred_fallthru
      _
    // Predicated region
    $region50: #{_lambda_.1} parent=1 // pred_check
      _
    $region51: #{_lambda_.1} parent=1 // pred_check_branch
      %94 = sbr.rel (0) target = $region53
    $region52: #{_lambda_.1} parent=1 // pred_region
      %95 = dma.done [#allocation3], 128
    $region53: #{_lambda_.1} parent=1 // pred_fallthru
      _
    // Predicated region
    $region54: #{_lambda_.1} parent=1 // pred_check
      _
    $region55: #{_lambda_.1} parent=1 // pred_check_branch
      %97 = sbr.rel (0) target = $region57
    $region56: #{_lambda_.1} parent=1 // pred_region
      %98 = dma.done [#allocation6], 64
    $region57: #{_lambda_.1} parent=1 // pred_fallthru
      _
    // Predicated region
    $region58: #{_lambda_.1} parent=1 // pred_check
      _
    $region59: #{_lambda_.1} parent=1 // pred_check_branch
      %100 = sbr.rel (0) target = $region61
    $region60: #{_lambda_.1} parent=1 // pred_region
      %101 = dma.done [#allocation6], 256
    $region61: #{_lambda_.1} parent=1 // pred_fallthru
      _
    // Predicated region
    $region62: #{_lambda_.1} parent=1 // pred_check
      _
    $region63: #{_lambda_.1} parent=1 // pred_check_branch
      %103 = sbr.rel (0) target = $region65
    $region64: #{_lambda_.1} parent=1 // pred_region
      %104 = dma.done [#allocation9], 10240
    $region65: #{_lambda_.1} parent=1 // pred_fallthru
      _
    // Predicated region
    $region66: #{_lambda_.1} parent=1 // pred_check
      _
    $region67: #{_lambda_.1} parent=1 // pred_check_branch
      %106 = sbr.rel (0) target = $region69
    $region68: #{_lambda_.1} parent=1 // pred_region
      %107 = dma.done [#allocation9], 5120
    $region69: #{_lambda_.1} parent=1 // pred_fallthru
      _
    %v109 = vld [vmem:[#allocation7] sm:$0xff]
    %v110 = vld [vmem:[#allocation7 + $0x8] sm:$0xff]
    %v111 = vld [vmem:[#allocation2] sm:$0xf]
    %v112 = vld [vmem:[#allocation2 + $0x4] sm:$0xf]
    %v113 = vld [vmem:[%s3] sm:$0x1]
    %v114 = vld [vmem:[%s4] sm:$0x1]
    %v115 = vld [vmem:[#allocation8] sm:$0xf]
    %v116 = vld [vmem:[#allocation8 + $0x4] sm:$0xf]
    %v117 = vld [vmem:[#allocation8 + $0x8] sm:$0xf]
    %v118 = vld [vmem:[#allocation8 + $0xc] sm:$0xf]
    %v119 = vld [vmem:[#allocation8 + $0x10] sm:$0xf]
    %v120 = vld [vmem:[#allocation8 + $0x14] sm:$0xf]
    %v121 = vld [vmem:[#allocation8 + $0x18] sm:$0xf]
    %v122 = vld [vmem:[#allocation8 + $0x1c] sm:$0xf]
    %v123 = vld [vmem:[#allocation8 + $0x20] sm:$0xf]
    %v124 = vld [vmem:[#allocation8 + $0x24] sm:$0xf]
    %v125 = vld [vmem:[#allocation8 + $0x28] sm:$0xf]
    %v126 = vld [vmem:[#allocation8 + $0x2c] sm:$0xf]
    %v127 = vld [vmem:[#allocation8 + $0x30] sm:$0xf]
    %v128 = vld [vmem:[#allocation8 + $0x34] sm:$0xf]
    %v129 = vld [vmem:[#allocation8 + $0x38] sm:$0xf]
    %v130 = vld [vmem:[#allocation8 + $0x3c] sm:$0xf]
    %v131 = vld [vmem:[#allocation8 + $0x40] sm:$0xf]
    %v132 = vld [vmem:[#allocation8 + $0x44] sm:$0xf]
    %v133 = vld [vmem:[#allocation8 + $0x48] sm:$0xf]
    %v134 = vld [vmem:[#allocation8 + $0x4c] sm:$0xf]
    %v135 = vld [vmem:[#allocation8 + $0x50] sm:$0xf]
    %v136 = vld [vmem:[#allocation8 + $0x54] sm:$0xf]
    %v137 = vld [vmem:[#allocation8 + $0x58] sm:$0xf]
    %v138 = vld [vmem:[#allocation8 + $0x5c] sm:$0xf]
    %v139 = vld [vmem:[#allocation8 + $0x60] sm:$0xf]
    %v140 = vld [vmem:[#allocation8 + $0x64] sm:$0xf]
    %v141 = vld [vmem:[#allocation8 + $0x68] sm:$0xf]
    %v142 = vld [vmem:[#allocation8 + $0x6c] sm:$0xf]
    %v143 = vld [vmem:[#allocation8 + $0x70] sm:$0xf]
    %v144 = vld [vmem:[#allocation8 + $0x74] sm:$0xf]
    %v145 = vld [vmem:[#allocation8 + $0x78] sm:$0xf]
    %v146 = vld [vmem:[#allocation8 + $0x7c] sm:$0xf]
    %v147 = vld [vmem:[#allocation8 + $0x80] sm:$0xf]
    %v148 = vld [vmem:[#allocation8 + $0x84] sm:$0xf]
    %v149 = vld [vmem:[#allocation8 + $0x88] sm:$0xf]
    %v150 = vld [vmem:[#allocation8 + $0x8c] sm:$0xf]
    %v151 = vld [vmem:[#allocation8 + $0x90] sm:$0xf]
    %v152 = vld [vmem:[#allocation8 + $0x94] sm:$0xf]
    %v153 = vld [vmem:[#allocation8 + $0x98] sm:$0xf]
    %v154 = vld [vmem:[#allocation8 + $0x9c] sm:$0xf]
    %v155 = vld [vmem:[#allocation8 + $0xa0] sm:$0xf]
    %v156 = vld [vmem:[#allocation8 + $0xa4] sm:$0xf]
    %v157 = vld [vmem:[#allocation8 + $0xa8] sm:$0xf]
    %v158 = vld [vmem:[#allocation8 + $0xac] sm:$0xf]
    %v159 = vld [vmem:[#allocation8 + $0xb0] sm:$0xf]
    %v160 = vld [vmem:[#allocation8 + $0xb4] sm:$0xf]
    %v161 = vld [vmem:[#allocation8 + $0xb8] sm:$0xf]
    %v162 = vld [vmem:[#allocation8 + $0xbc] sm:$0xf]
    %v163 = vld [vmem:[#allocation8 + $0xc0] sm:$0xf]
    %v164 = vld [vmem:[#allocation8 + $0xc4] sm:$0xf]
    %v165 = vld [vmem:[#allocation8 + $0xc8] sm:$0xf]
    %v166 = vld [vmem:[#allocation8 + $0xcc] sm:$0xf]
    %v167 = vld [vmem:[#allocation8 + $0xd0] sm:$0xf]
    %v168 = vld [vmem:[#allocation8 + $0xd4] sm:$0xf]
    %v169 = vld [vmem:[#allocation8 + $0xd8] sm:$0xf]
    %v170 = vld [vmem:[#allocation8 + $0xdc] sm:$0xf]
    %v171 = vld [vmem:[#allocation8 + $0xe0] sm:$0xf]
    %v172 = vld [vmem:[#allocation8 + $0xe4] sm:$0xf]
    %v173 = vld [vmem:[#allocation8 + $0xe8] sm:$0xf]
    %v174 = vld [vmem:[#allocation8 + $0xec] sm:$0xf]
    %v175 = vld [vmem:[#allocation8 + $0xf0] sm:$0xf]
    %v176 = vld [vmem:[#allocation8 + $0xf4] sm:$0xf]
    %v177 = vld [vmem:[#allocation8 + $0xf8] sm:$0xf]
    %v178 = vld [vmem:[#allocation8 + $0xfc] sm:$0xf]
    %v179 = vld [vmem:[#allocation8 + $0x100] sm:$0xf]
    %v180 = vld [vmem:[#allocation8 + $0x104] sm:$0xf]
    %v181 = vld [vmem:[#allocation8 + $0x108] sm:$0xf]
    %v182 = vld [vmem:[#allocation8 + $0x10c] sm:$0xf]
    %v183 = vld [vmem:[#allocation8 + $0x110] sm:$0xf]
    %v184 = vld [vmem:[#allocation8 + $0x114] sm:$0xf]
    %v185 = vld [vmem:[#allocation8 + $0x118] sm:$0xf]
    %v186 = vld [vmem:[#allocation8 + $0x11c] sm:$0xf]
    %v187 = vld [vmem:[#allocation8 + $0x120] sm:$0xf]
    %v188 = vld [vmem:[#allocation8 + $0x124] sm:$0xf]
    %v189 = vld [vmem:[#allocation8 + $0x128] sm:$0xf]
    %v190 = vld [vmem:[#allocation8 + $0x12c] sm:$0xf]
    %v191 = vld [vmem:[#allocation8 + $0x130] sm:$0xf]
    %v192 = vld [vmem:[#allocation8 + $0x134] sm:$0xf]
    %v193 = vld [vmem:[#allocation8 + $0x138] sm:$0xf]
    %v194 = vld [vmem:[#allocation8 + $0x13c] sm:$0xf]
    %v195 = vld [vmem:[%s6] sm:$0x1]
    %v196 = vlaneseq
    %v197 = vand.u32 %v196, 127
    %vm198 = vcmp.lt.s32.totalorder %v197, 8
    %v199 = vsel %vm198, 1, 0
    %v200 = vcvt.s32.f32 %v199
    %201 = vadd.xlane.f32.xlu0 %v109
    %v202 = vpop.xlane.xlu0 %201
    %203 = vadd.xlane.f32.xlu0 %v110
    %v204 = vpop.xlane.xlu0 %203
    %v205 = vmul.f32 %v202, 0.125
    %v206 = vmul.f32 %v204, 0.125
    %v207 = vsub.f32 %v109, %v205
    %v208 = vsub.f32 %v110, %v206
    %v209 = vmul.f32 %v207, %v200
    %v210 = vmul.f32 %v208, %v200
    %v211 = vmul.f32 %v209, %v209
    %v212 = vmul.f32 %v210, %v210
    %213 = vadd.xlane.f32.xlu0 %v211
    %v214 = vpop.xlane.xlu0 %213
    %215 = vadd.xlane.f32.xlu0 %v212
    %v216 = vpop.xlane.xlu0 %215
    %v217 = vmul.f32 %v214, 0.125
    %v218 = vmul.f32 %v216, 0.125
    %v219 = vadd.f32 %v217, 1e-05
    %v220 = vadd.f32 %v218, 1e-05
    %v221 = vrsqrt.pop %v219
    %v222 = vrsqrt.pop %v220
    %v223 = vmul.f32 %v209, %v221
    %v224 = vmul.f32 %v210, %v222
    %v226 = vlaneseq
    %v227 = vshrl.u32 %v226, 7
    %v228 = vsub.s32 0, %v227
    %v229 = vrot.slane %v113, %v228
    %v231 = vmul.f32 %v223, %v229
    %v232 = vmul.f32 %v224, %v229
    %v234 = vlaneseq
    %v235 = vshrl.u32 %v234, 7
    %v236 = vsub.s32 0, %v235
    %v237 = vrot.slane %v114, %v236
    %v239 = vadd.f32 %v231, %v237
    %v240 = vadd.f32 %v232, %v237
    %v241 = vsub.f32 %v239, -2.0
    %v242 = vsub.f32 %v240, -2.0
    %v243 = vmul.f32 %v241, 0.75
    %v244 = vmul.f32 %v242, 0.75
    %v245 = vmul.f32 %v243, %v243
    %v246 = vmul.f32 %v244, %v244
    %v247 = vsub.f32 0.0, %v245
    %v248 = vsub.f32 0.0, %v246
    %v249 = vmul.f32 %v247, 1.442695
    %v250 = vpow.pop %v249
    %v251 = vmul.f32 %v248, 1.442695
    %v252 = vpow.pop %v251
    %v253 = vpack.c.bf16 %v252, %v250
    %v254 = vsub.f32 %v239, -0.6666667
    %v255 = vsub.f32 %v240, -0.6666667
    %v256 = vmul.f32 %v254, 0.75
    %v257 = vmul.f32 %v255, 0.75
    %v258 = vmul.f32 %v256, %v256
    %v259 = vmul.f32 %v257, %v257
    %v260 = vsub.f32 0.0, %v258
    %v261 = vsub.f32 0.0, %v259
    %v262 = vmul.f32 %v260, 1.442695
    %v263 = vpow.pop %v262
    %v264 = vmul.f32 %v261, 1.442695
    %v265 = vpow.pop %v264
    %v266 = vpack.c.bf16 %v265, %v263
    %v267 = vsub.f32 %v239, 0.6666667
    %v268 = vsub.f32 %v240, 0.6666667
    %v269 = vmul.f32 %v267, 0.75
    %v270 = vmul.f32 %v268, 0.75
    %v271 = vmul.f32 %v269, %v269
    %v272 = vmul.f32 %v270, %v270
    %v273 = vsub.f32 0.0, %v271
    %v274 = vsub.f32 0.0, %v272
    %v275 = vmul.f32 %v273, 1.442695
    %v276 = vpow.pop %v275
    %v277 = vmul.f32 %v274, 1.442695
    %v278 = vpow.pop %v277
    %v279 = vpack.c.bf16 %v278, %v276
    %v280 = vsub.f32 %v239, 2.0
    %v281 = vsub.f32 %v240, 2.0
    %v282 = vmul.f32 %v280, 0.75
    %v283 = vmul.f32 %v281, 0.75
    %v284 = vmul.f32 %v282, %v282
    %v285 = vmul.f32 %v283, %v283
    %v286 = vsub.f32 0.0, %v284
    %v287 = vsub.f32 0.0, %v285
    %v288 = vmul.f32 %v286, 1.442695
    %v289 = vpow.pop %v288
    %v290 = vmul.f32 %v287, 1.442695
    %v291 = vpow.pop %v290
    %v292 = vpack.c.bf16 %v291, %v289
    %v293 = vxor.u32 %v109, 2147483648
    %v294 = vxor.u32 %v110, 2147483648
    %v295 = vmul.f32 %v293, 1.442695
    %v296 = vpow.pop %v295
    %v297 = vmul.f32 %v294, 1.442695
    %v298 = vpow.pop %v297
    %v299 = vadd.f32 %v296, 1.0
    %v300 = vadd.f32 %v298, 1.0
    %v301 = vrcp.pop %v299
    %v302 = vmul.f32 1.0, %v301
    %v303 = vrcp.pop %v300
    %v304 = vmul.f32 1.0, %v303
    %v305 = vmul.f32 %v109, %v302
    %v306 = vmul.f32 %v110, %v304
    %v307 = vpack.c.bf16 %v306, %v305
    %v309 = vlaneseq
    %v310 = vshrl.u32 %v309, 7
    %v311 = vsub.s32 0, %v310
    %v312 = vrot.slane %v195, %v311
    %v394 = vunpack.c.l.b16 %v115
    %v395 = vunpack.c.l.b16 %v116
    %v396 = vunpack.c.l.b16 %v117
    %v397 = vunpack.c.l.b16 %v118
    %v398 = vunpack.c.l.b16 %v119
    %v399 = vunpack.c.l.b16 %v120
    %v400 = vunpack.c.l.b16 %v121
    %v401 = vunpack.c.l.b16 %v122
    %v402 = vunpack.c.l.b16 %v123
    %v403 = vunpack.c.l.b16 %v124
    %v404 = vunpack.c.l.b16 %v125
    %v405 = vunpack.c.l.b16 %v126
    %v406 = vunpack.c.l.b16 %v127
    %v407 = vunpack.c.l.b16 %v128
    %v408 = vunpack.c.l.b16 %v129
    %v409 = vunpack.c.l.b16 %v130
    %v410 = vunpack.c.l.b16 %v131
    %v411 = vunpack.c.l.b16 %v132
    %v412 = vunpack.c.l.b16 %v133
    %v413 = vunpack.c.l.b16 %v134
    %v414 = vunpack.c.l.b16 %v135
    %v415 = vunpack.c.l.b16 %v136
    %v416 = vunpack.c.l.b16 %v137
    %v417 = vunpack.c.l.b16 %v138
    %v418 = vunpack.c.l.b16 %v139
    %v419 = vunpack.c.l.b16 %v140
    %v420 = vunpack.c.l.b16 %v141
    %v421 = vunpack.c.l.b16 %v142
    %v422 = vunpack.c.l.b16 %v143
    %v423 = vunpack.c.l.b16 %v144
    %v424 = vunpack.c.l.b16 %v145
    %v425 = vunpack.c.l.b16 %v146
    %v426 = vunpack.c.l.b16 %v147
    %v427 = vunpack.c.l.b16 %v148
    %v428 = vunpack.c.l.b16 %v149
    %v429 = vunpack.c.l.b16 %v150
    %v430 = vunpack.c.l.b16 %v151
    %v431 = vunpack.c.l.b16 %v152
    %v432 = vunpack.c.l.b16 %v153
    %v433 = vunpack.c.l.b16 %v154
    %v434 = vunpack.c.l.b16 %v155
    %v435 = vunpack.c.l.b16 %v156
    %v436 = vunpack.c.l.b16 %v157
    %v437 = vunpack.c.l.b16 %v158
    %v438 = vunpack.c.l.b16 %v159
    %v439 = vunpack.c.l.b16 %v160
    %v440 = vunpack.c.l.b16 %v161
    %v441 = vunpack.c.l.b16 %v162
    %v442 = vunpack.c.l.b16 %v163
    %v443 = vunpack.c.l.b16 %v164
    %v444 = vunpack.c.l.b16 %v165
    %v445 = vunpack.c.l.b16 %v166
    %v446 = vunpack.c.l.b16 %v167
    %v447 = vunpack.c.l.b16 %v168
    %v448 = vunpack.c.l.b16 %v169
    %v449 = vunpack.c.l.b16 %v170
    %v450 = vunpack.c.l.b16 %v171
    %v451 = vunpack.c.l.b16 %v172
    %v452 = vunpack.c.l.b16 %v173
    %v453 = vunpack.c.l.b16 %v174
    %v454 = vunpack.c.l.b16 %v175
    %v455 = vunpack.c.l.b16 %v176
    %v456 = vunpack.c.l.b16 %v177
    %v457 = vunpack.c.l.b16 %v178
    %v458 = vunpack.c.l.b16 %v179
    %v459 = vunpack.c.l.b16 %v180
    %v460 = vunpack.c.l.b16 %v181
    %v461 = vunpack.c.l.b16 %v182
    %v462 = vunpack.c.l.b16 %v183
    %v463 = vunpack.c.l.b16 %v184
    %v464 = vunpack.c.l.b16 %v185
    %v465 = vunpack.c.l.b16 %v186
    %v466 = vunpack.c.l.b16 %v187
    %v467 = vunpack.c.l.b16 %v188
    %v468 = vunpack.c.l.b16 %v189
    %v469 = vunpack.c.l.b16 %v190
    %v470 = vunpack.c.l.b16 %v191
    %v471 = vunpack.c.l.b16 %v192
    %v472 = vunpack.c.l.b16 %v193
    %v473 = vunpack.c.l.b16 %v194
    %v474 = vpack.c.b16 %v395, %v394
    %v475 = vpack.c.b16 %v397, %v396
    %v476 = vpack.c.b16 %v399, %v398
    %v477 = vpack.c.b16 %v401, %v400
    %v478 = vpack.c.b16 %v403, %v402
    %v479 = vpack.c.b16 %v405, %v404
    %v480 = vpack.c.b16 %v407, %v406
    %v481 = vpack.c.b16 %v409, %v408
    %v482 = vpack.c.b16 %v411, %v410
    %v483 = vpack.c.b16 %v413, %v412
    %v484 = vpack.c.b16 %v415, %v414
    %v485 = vpack.c.b16 %v417, %v416
    %v486 = vpack.c.b16 %v419, %v418
    %v487 = vpack.c.b16 %v421, %v420
    %v488 = vpack.c.b16 %v423, %v422
    %v489 = vpack.c.b16 %v425, %v424
    %v490 = vpack.c.b16 %v427, %v426
    %v491 = vpack.c.b16 %v429, %v428
    %v492 = vpack.c.b16 %v431, %v430
    %v493 = vpack.c.b16 %v433, %v432
    %v494 = vpack.c.b16 %v435, %v434
    %v495 = vpack.c.b16 %v437, %v436
    %v496 = vpack.c.b16 %v439, %v438
    %v497 = vpack.c.b16 %v441, %v440
    %v498 = vpack.c.b16 %v443, %v442
    %v499 = vpack.c.b16 %v445, %v444
    %v500 = vpack.c.b16 %v447, %v446
    %v501 = vpack.c.b16 %v449, %v448
    %v502 = vpack.c.b16 %v451, %v450
    %v503 = vpack.c.b16 %v453, %v452
    %v504 = vpack.c.b16 %v455, %v454
    %v505 = vpack.c.b16 %v457, %v456
    %v506 = vpack.c.b16 %v459, %v458
    %v507 = vpack.c.b16 %v461, %v460
    %v508 = vpack.c.b16 %v463, %v462
    %v509 = vpack.c.b16 %v465, %v464
    %v510 = vpack.c.b16 %v467, %v466
    %v511 = vpack.c.b16 %v469, %v468
    %v512 = vpack.c.b16 %v471, %v470
    %v513 = vpack.c.b16 %v473, %v472
    %554 = vmatprep.subr.bf16.mxu0 0
    %555 = vmatpush1.bf16.msra.mxu0 %v474
    %556 = vmatprep.subr.bf16.mxu0 0
    %557 = vmatpush1.bf16.msra.mxu0 %v475
    %558 = vmatprep.subr.bf16.mxu0 0
    %559 = vmatpush1.bf16.msra.mxu0 %v476
    %560 = vmatprep.subr.bf16.mxu0 0
    %561 = vmatpush1.bf16.msra.mxu0 %v477
    %562 = vmatprep.subr.bf16.mxu0 0
    %563 = vmatpush1.bf16.msra.mxu0 %v478
    %564 = vmatprep.subr.bf16.mxu0 0
    %565 = vmatpush1.bf16.msra.mxu0 %v479
    %566 = vmatprep.subr.bf16.mxu0 0
    %567 = vmatpush1.bf16.msra.mxu0 %v480
    %568 = vmatprep.subr.bf16.mxu0 0
    %569 = vmatpush1.bf16.msra.mxu0 %v481
    %570 = vmatprep.subr.bf16.mxu0 0
    %571 = vmatpush1.bf16.msra.mxu0 %v482
    %572 = vmatprep.subr.bf16.mxu0 0
    %573 = vmatpush1.bf16.msra.mxu0 %v483
    %574 = vmatprep.subr.bf16.mxu0 0
    %575 = vmatpush1.bf16.msra.mxu0 %v484
    %576 = vmatprep.subr.bf16.mxu0 0
    %577 = vmatpush1.bf16.msra.mxu0 %v485
    %578 = vmatprep.subr.bf16.mxu0 0
    %579 = vmatpush1.bf16.msra.mxu0 %v486
    %580 = vmatprep.subr.bf16.mxu0 0
    %581 = vmatpush1.bf16.msra.mxu0 %v487
    %582 = vmatprep.subr.bf16.mxu0 0
    %583 = vmatpush1.bf16.msra.mxu0 %v488
    %584 = vmatprep.subr.bf16.mxu0 0
    %585 = vmatpush1.bf16.msra.mxu0 %v489
    %586 = vmatprep.mubr.bf16.mxu0 %v266
    %587 = vmatmul.mubr.bf16.gmra.mrb[0].mxu0 %v253
    %v588 = vpop.f32.mrb[0].mxu0
    %v589 = vadd.f32 %v312, %v588
    %v590 = vpop.f32.mrb[0].mxu0
    %v591 = vpop.f32.mrb[0].mxu0
    %v592 = vadd.f32 %v312, %v591
    %v593 = vpop.f32.mrb[0].mxu0
    %594 = vdwg.mxu0
    %595 = vmatprep.subr.bf16.mxu0 0
    %596 = vmatpush1.bf16.msra.mxu0 %v490
    %597 = vmatprep.subr.bf16.mxu0 0
    %598 = vmatpush1.bf16.msra.mxu0 %v491
    %599 = vmatprep.subr.bf16.mxu0 0
    %600 = vmatpush1.bf16.msra.mxu0 %v492
    %601 = vmatprep.subr.bf16.mxu0 0
    %602 = vmatpush1.bf16.msra.mxu0 %v493
    %603 = vmatprep.subr.bf16.mxu0 0
    %604 = vmatpush1.bf16.msra.mxu0 %v494
    %605 = vmatprep.subr.bf16.mxu0 0
    %606 = vmatpush1.bf16.msra.mxu0 %v495
    %607 = vmatprep.subr.bf16.mxu0 0
    %608 = vmatpush1.bf16.msra.mxu0 %v496
    %609 = vmatprep.subr.bf16.mxu0 0
    %610 = vmatpush1.bf16.msra.mxu0 %v497
    %611 = vmatprep.subr.bf16.mxu0 0
    %612 = vmatpush1.bf16.msra.mxu0 %v498
    %613 = vmatprep.subr.bf16.mxu0 0
    %614 = vmatpush1.bf16.msra.mxu0 %v499
    %615 = vmatprep.subr.bf16.mxu0 0
    %616 = vmatpush1.bf16.msra.mxu0 %v500
    %617 = vmatprep.subr.bf16.mxu0 0
    %618 = vmatpush1.bf16.msra.mxu0 %v501
    %619 = vmatprep.subr.bf16.mxu0 0
    %620 = vmatpush1.bf16.msra.mxu0 %v502
    %621 = vmatprep.subr.bf16.mxu0 0
    %622 = vmatpush1.bf16.msra.mxu0 %v503
    %623 = vmatprep.subr.bf16.mxu0 0
    %624 = vmatpush1.bf16.msra.mxu0 %v504
    %625 = vmatprep.subr.bf16.mxu0 0
    %626 = vmatpush1.bf16.msra.mxu0 %v505
    %627 = vmatprep.mubr.bf16.mxu0 %v292
    %628 = vmatmul.mubr.bf16.gmra.mrb[0].mxu0 %v279
    %v629 = vpop.f32.mrb[0].mxu0
    %v630 = vadd.f32 %v589, %v629
    %v631 = vpop.f32.mrb[0].mxu0
    %v632 = vpop.f32.mrb[0].mxu0
    %v633 = vadd.f32 %v592, %v632
    %v634 = vpop.f32.mrb[0].mxu0
    %635 = vdwg.mxu0
    %636 = vmatprep.subr.bf16.mxu0 0
    %637 = vmatpush1.bf16.msra.mxu0 %v506
    %638 = vmatprep.subr.bf16.mxu0 0
    %639 = vmatpush1.bf16.msra.mxu0 %v507
    %640 = vmatprep.subr.bf16.mxu0 0
    %641 = vmatpush1.bf16.msra.mxu0 %v508
    %642 = vmatprep.subr.bf16.mxu0 0
    %643 = vmatpush1.bf16.msra.mxu0 %v509
    %644 = vmatprep.subr.bf16.mxu0 0
    %645 = vmatpush1.bf16.msra.mxu0 %v510
    %646 = vmatprep.subr.bf16.mxu0 0
    %647 = vmatpush1.bf16.msra.mxu0 %v511
    %648 = vmatprep.subr.bf16.mxu0 0
    %649 = vmatpush1.bf16.msra.mxu0 %v512
    %650 = vmatprep.subr.bf16.mxu0 0
    %651 = vmatpush1.bf16.msra.mxu0 %v513
    %652 = vmatprep.subr.bf16.mxu0 0
    %653 = vmatpush1.bf16.msra.mxu0 0
    %654 = vmatprep.subr.bf16.mxu0 0
    %655 = vmatpush1.bf16.msra.mxu0 0
    %656 = vmatprep.subr.bf16.mxu0 0
    %657 = vmatpush1.bf16.msra.mxu0 0
    %658 = vmatprep.subr.bf16.mxu0 0
    %659 = vmatpush1.bf16.msra.mxu0 0
    %660 = vmatprep.subr.bf16.mxu0 0
    %661 = vmatpush1.bf16.msra.mxu0 0
    %662 = vmatprep.subr.bf16.mxu0 0
    %663 = vmatpush1.bf16.msra.mxu0 0
    %664 = vmatprep.subr.bf16.mxu0 0
    %665 = vmatpush1.bf16.msra.mxu0 0
    %666 = vmatprep.subr.bf16.mxu0 0
    %667 = vmatpush1.bf16.msra.mxu0 0
    %668 = vmatprep.mubr.bf16.mxu0 0
    %669 = vmatmul.mubr.bf16.gmra.mrb[0].mxu0 %v307
    %v670 = vpop.f32.mrb[0].mxu0
    %v671 = vadd.f32 %v630, %v670
    %v672 = vpop.f32.mrb[0].mxu0
    %v673 = vpop.f32.mrb[0].mxu0
    %v674 = vadd.f32 %v633, %v673
    %v675 = vpop.f32.mrb[0].mxu0
    %676 = vdwg.mxu0
    %v677 = vpack.c.bf16 %v674, %v671
    %v678 = vld [vmem:[%s7] sm:$0x1]
    %v680 = vlaneseq
    %v681 = vshrl.u32 %v680, 7
    %v682 = vsub.s32 0, %v681
    %v683 = vrot.slane %v678, %v682
    %v687 = vunpack.c.l.b16 %v111
    %v688 = vunpack.c.l.b16 %v112
    %v689 = vpack.c.b16 %v688, %v687
    %vm690 = vcmask 130048
    %v692 = vsel %vm690, %v689, 0
    %694 = vmatprep.subr.bf16.mxu0 0
    %695 = vmatpush1.bf16.msra.mxu0 %v677
    %696 = vmatprep.subr.bf16.mxu0 0
    %697 = vmatpush1.bf16.msra.mxu0 0
    %698 = vmatprep.subr.bf16.mxu0 0
    %699 = vmatpush1.bf16.msra.mxu0 0
    %700 = vmatprep.subr.bf16.mxu0 0
    %701 = vmatpush1.bf16.msra.mxu0 0
    %702 = vmatprep.subr.bf16.mxu0 0
    %703 = vmatpush1.bf16.msra.mxu0 0
    %704 = vmatprep.subr.bf16.mxu0 0
    %705 = vmatpush1.bf16.msra.mxu0 0
    %706 = vmatprep.subr.bf16.mxu0 0
    %707 = vmatpush1.bf16.msra.mxu0 0
    %708 = vmatprep.subr.bf16.mxu0 0
    %709 = vmatpush1.bf16.msra.mxu0 0
    %710 = vmatprep.subr.bf16.mxu0 0
    %711 = vmatpush1.bf16.msra.mxu0 0
    %712 = vmatprep.subr.bf16.mxu0 0
    %713 = vmatpush1.bf16.msra.mxu0 0
    %714 = vmatprep.subr.bf16.mxu0 0
    %715 = vmatpush1.bf16.msra.mxu0 0
    %716 = vmatprep.subr.bf16.mxu0 0
    %717 = vmatpush1.bf16.msra.mxu0 0
    %718 = vmatprep.subr.bf16.mxu0 0
    %719 = vmatpush1.bf16.msra.mxu0 0
    %720 = vmatprep.subr.bf16.mxu0 0
    %721 = vmatpush1.bf16.msra.mxu0 0
    %722 = vmatprep.subr.bf16.mxu0 0
    %723 = vmatpush1.bf16.msra.mxu0 0
    %724 = vmatprep.subr.bf16.mxu0 0
    %725 = vmatpush1.bf16.msra.mxu0 0
    %726 = vmatprep.mubr.bf16.mxu0 0
    %727 = vmatmul.mubr.bf16.gmra.mrb[0].mxu0 %v692
    %v728 = vpop.f32.mrb[0].mxu0
    %v729 = vadd.f32 %v683, %v728
    %v730 = vpop.f32.mrb[0].mxu0
    %v731 = vpop.f32.mrb[0].mxu0
    %v732 = vadd.f32 %v683, %v731
    %v733 = vpop.f32.mrb[0].mxu0
    %734 = vdwg.mxu0
    %v735 = vxor.u32 %v729, 2147483648
    %v736 = vxor.u32 %v732, 2147483648
    %v737 = vmul.f32 %v735, 1.442695
    %v738 = vpow.pop %v737
    %v739 = vmul.f32 %v736, 1.442695
    %v740 = vpow.pop %v739
    %v741 = vadd.f32 %v738, 1.0
    %v742 = vadd.f32 %v740, 1.0
    %v743 = vrcp.pop %v741
    %v744 = vmul.f32 1.0, %v743
    %v745 = vrcp.pop %v742
    %v746 = vmul.f32 1.0, %v745
    %v747 = vmul.f32 %v729, %v744
    %v748 = vmul.f32 %v732, %v746
    %s749 = scalar_lea.vmem %s3, 1
    %v750 = vld [vmem:[%s749] sm:$0x1]
    %s751 = scalar_lea.vmem %s4, 1
    %v752 = vld [vmem:[%s751] sm:$0x1]
    %s753 = scalar_lea.vmem [#allocation8], 320
    %v754 = vld [vmem:[%s753] sm:$0xf]
    %v755 = vld [vmem:[%s753 + $0x4] sm:$0xf]
    %v756 = vld [vmem:[%s753 + $0x8] sm:$0xf]
    %v757 = vld [vmem:[%s753 + $0xc] sm:$0xf]
    %v758 = vld [vmem:[%s753 + $0x10] sm:$0xf]
    %v759 = vld [vmem:[%s753 + $0x14] sm:$0xf]
    %v760 = vld [vmem:[%s753 + $0x18] sm:$0xf]
    %v761 = vld [vmem:[%s753 + $0x1c] sm:$0xf]
    %v762 = vld [vmem:[%s753 + $0x20] sm:$0xf]
    %v763 = vld [vmem:[%s753 + $0x24] sm:$0xf]
    %v764 = vld [vmem:[%s753 + $0x28] sm:$0xf]
    %v765 = vld [vmem:[%s753 + $0x2c] sm:$0xf]
    %v766 = vld [vmem:[%s753 + $0x30] sm:$0xf]
    %v767 = vld [vmem:[%s753 + $0x34] sm:$0xf]
    %v768 = vld [vmem:[%s753 + $0x38] sm:$0xf]
    %v769 = vld [vmem:[%s753 + $0x3c] sm:$0xf]
    %v770 = vld [vmem:[%s753 + $0x40] sm:$0xf]
    %v771 = vld [vmem:[%s753 + $0x44] sm:$0xf]
    %v772 = vld [vmem:[%s753 + $0x48] sm:$0xf]
    %v773 = vld [vmem:[%s753 + $0x4c] sm:$0xf]
    %v774 = vld [vmem:[%s753 + $0x50] sm:$0xf]
    %v775 = vld [vmem:[%s753 + $0x54] sm:$0xf]
    %v776 = vld [vmem:[%s753 + $0x58] sm:$0xf]
    %v777 = vld [vmem:[%s753 + $0x5c] sm:$0xf]
    %v778 = vld [vmem:[%s753 + $0x60] sm:$0xf]
    %v779 = vld [vmem:[%s753 + $0x64] sm:$0xf]
    %v780 = vld [vmem:[%s753 + $0x68] sm:$0xf]
    %v781 = vld [vmem:[%s753 + $0x6c] sm:$0xf]
    %v782 = vld [vmem:[%s753 + $0x70] sm:$0xf]
    %v783 = vld [vmem:[%s753 + $0x74] sm:$0xf]
    %v784 = vld [vmem:[%s753 + $0x78] sm:$0xf]
    %v785 = vld [vmem:[%s753 + $0x7c] sm:$0xf]
    %v786 = vld [vmem:[%s753 + $0x80] sm:$0xf]
    %v787 = vld [vmem:[%s753 + $0x84] sm:$0xf]
    %v788 = vld [vmem:[%s753 + $0x88] sm:$0xf]
    %v789 = vld [vmem:[%s753 + $0x8c] sm:$0xf]
    %v790 = vld [vmem:[%s753 + $0x90] sm:$0xf]
    %v791 = vld [vmem:[%s753 + $0x94] sm:$0xf]
    %v792 = vld [vmem:[%s753 + $0x98] sm:$0xf]
    %v793 = vld [vmem:[%s753 + $0x9c] sm:$0xf]
    %v794 = vld [vmem:[%s753 + $0xa0] sm:$0xf]
    %v795 = vld [vmem:[%s753 + $0xa4] sm:$0xf]
    %v796 = vld [vmem:[%s753 + $0xa8] sm:$0xf]
    %v797 = vld [vmem:[%s753 + $0xac] sm:$0xf]
    %v798 = vld [vmem:[%s753 + $0xb0] sm:$0xf]
    %v799 = vld [vmem:[%s753 + $0xb4] sm:$0xf]
    %v800 = vld [vmem:[%s753 + $0xb8] sm:$0xf]
    %v801 = vld [vmem:[%s753 + $0xbc] sm:$0xf]
    %v802 = vld [vmem:[%s753 + $0xc0] sm:$0xf]
    %v803 = vld [vmem:[%s753 + $0xc4] sm:$0xf]
    %v804 = vld [vmem:[%s753 + $0xc8] sm:$0xf]
    %v805 = vld [vmem:[%s753 + $0xcc] sm:$0xf]
    %v806 = vld [vmem:[%s753 + $0xd0] sm:$0xf]
    %v807 = vld [vmem:[%s753 + $0xd4] sm:$0xf]
    %v808 = vld [vmem:[%s753 + $0xd8] sm:$0xf]
    %v809 = vld [vmem:[%s753 + $0xdc] sm:$0xf]
    %v810 = vld [vmem:[%s753 + $0xe0] sm:$0xf]
    %v811 = vld [vmem:[%s753 + $0xe4] sm:$0xf]
    %v812 = vld [vmem:[%s753 + $0xe8] sm:$0xf]
    %v813 = vld [vmem:[%s753 + $0xec] sm:$0xf]
    %v814 = vld [vmem:[%s753 + $0xf0] sm:$0xf]
    %v815 = vld [vmem:[%s753 + $0xf4] sm:$0xf]
    %v816 = vld [vmem:[%s753 + $0xf8] sm:$0xf]
    %v817 = vld [vmem:[%s753 + $0xfc] sm:$0xf]
    %v818 = vld [vmem:[%s753 + $0x100] sm:$0xf]
    %v819 = vld [vmem:[%s753 + $0x104] sm:$0xf]
    %v820 = vld [vmem:[%s753 + $0x108] sm:$0xf]
    %v821 = vld [vmem:[%s753 + $0x10c] sm:$0xf]
    %v822 = vld [vmem:[%s753 + $0x110] sm:$0xf]
    %v823 = vld [vmem:[%s753 + $0x114] sm:$0xf]
    %v824 = vld [vmem:[%s753 + $0x118] sm:$0xf]
    %v825 = vld [vmem:[%s753 + $0x11c] sm:$0xf]
    %v826 = vld [vmem:[%s753 + $0x120] sm:$0xf]
    %v827 = vld [vmem:[%s753 + $0x124] sm:$0xf]
    %v828 = vld [vmem:[%s753 + $0x128] sm:$0xf]
    %v829 = vld [vmem:[%s753 + $0x12c] sm:$0xf]
    %v830 = vld [vmem:[%s753 + $0x130] sm:$0xf]
    %v831 = vld [vmem:[%s753 + $0x134] sm:$0xf]
    %v832 = vld [vmem:[%s753 + $0x138] sm:$0xf]
    %v833 = vld [vmem:[%s753 + $0x13c] sm:$0xf]
    %s834 = scalar_lea.vmem %s6, 1
    %v835 = vld [vmem:[%s834] sm:$0x1]
    %vm836 = vcmp.lt.s32.totalorder %v197, 32
    %v837 = vsel %vm836, 1, 0
    %v838 = vcvt.s32.f32 %v837
    %839 = vadd.xlane.f32.xlu0 %v747
    %v840 = vpop.xlane.xlu0 %839
    %841 = vadd.xlane.f32.xlu0 %v748
    %v842 = vpop.xlane.xlu0 %841
    %v843 = vmul.f32 %v840, 0.03125
    %v844 = vmul.f32 %v842, 0.03125
    %v845 = vsub.f32 %v747, %v843
    %v846 = vsub.f32 %v748, %v844
    %v847 = vmul.f32 %v845, %v838
    %v848 = vmul.f32 %v846, %v838
    %v849 = vmul.f32 %v847, %v847
    %v850 = vmul.f32 %v848, %v848
    %851 = vadd.xlane.f32.xlu0 %v849
    %v852 = vpop.xlane.xlu0 %851
    %853 = vadd.xlane.f32.xlu0 %v850
    %v854 = vpop.xlane.xlu0 %853
    %v855 = vmul.f32 %v852, 0.03125
    %v856 = vmul.f32 %v854, 0.03125
    %v857 = vadd.f32 %v855, 1e-05
    %v858 = vadd.f32 %v856, 1e-05
    %v859 = vrsqrt.pop %v857
    %v860 = vrsqrt.pop %v858
    %v861 = vmul.f32 %v847, %v859
    %v862 = vmul.f32 %v848, %v860
    %v864 = vlaneseq
    %v865 = vshrl.u32 %v864, 7
    %v866 = vsub.s32 0, %v865
    %v867 = vrot.slane %v750, %v866
    %v869 = vmul.f32 %v861, %v867
    %v870 = vmul.f32 %v862, %v867
    %v872 = vlaneseq
    %v873 = vshrl.u32 %v872, 7
    %v874 = vsub.s32 0, %v873
    %v875 = vrot.slane %v752, %v874
    %v877 = vadd.f32 %v869, %v875
    %v878 = vadd.f32 %v870, %v875
    %v879 = vsub.f32 %v877, -2.0
    %v880 = vsub.f32 %v878, -2.0
    %v881 = vmul.f32 %v879, 0.75
    %v882 = vmul.f32 %v880, 0.75
    %v883 = vmul.f32 %v881, %v881
    %v884 = vmul.f32 %v882, %v882
    %v885 = vsub.f32 0.0, %v883
    %v886 = vsub.f32 0.0, %v884
    %v887 = vmul.f32 %v885, 1.442695
    %v888 = vpow.pop %v887
    %v889 = vmul.f32 %v886, 1.442695
    %v890 = vpow.pop %v889
    %v891 = vpack.c.bf16 %v890, %v888
    %v892 = vsub.f32 %v877, -0.6666667
    %v893 = vsub.f32 %v878, -0.6666667
    %v894 = vmul.f32 %v892, 0.75
    %v895 = vmul.f32 %v893, 0.75
    %v896 = vmul.f32 %v894, %v894
    %v897 = vmul.f32 %v895, %v895
    %v898 = vsub.f32 0.0, %v896
    %v899 = vsub.f32 0.0, %v897
    %v900 = vmul.f32 %v898, 1.442695
    %v901 = vpow.pop %v900
    %v902 = vmul.f32 %v899, 1.442695
    %v903 = vpow.pop %v902
    %v904 = vpack.c.bf16 %v903, %v901
    %v905 = vsub.f32 %v877, 0.6666667
    %v906 = vsub.f32 %v878, 0.6666667
    %v907 = vmul.f32 %v905, 0.75
    %v908 = vmul.f32 %v906, 0.75
    %v909 = vmul.f32 %v907, %v907
    %v910 = vmul.f32 %v908, %v908
    %v911 = vsub.f32 0.0, %v909
    %v912 = vsub.f32 0.0, %v910
    %v913 = vmul.f32 %v911, 1.442695
    %v914 = vpow.pop %v913
    %v915 = vmul.f32 %v912, 1.442695
    %v916 = vpow.pop %v915
    %v917 = vpack.c.bf16 %v916, %v914
    %v918 = vsub.f32 %v877, 2.0
    %v919 = vsub.f32 %v878, 2.0
    %v920 = vmul.f32 %v918, 0.75
    %v921 = vmul.f32 %v919, 0.75
    %v922 = vmul.f32 %v920, %v920
    %v923 = vmul.f32 %v921, %v921
    %v924 = vsub.f32 0.0, %v922
    %v925 = vsub.f32 0.0, %v923
    %v926 = vmul.f32 %v924, 1.442695
    %v927 = vpow.pop %v926
    %v928 = vmul.f32 %v925, 1.442695
    %v929 = vpow.pop %v928
    %v930 = vpack.c.bf16 %v929, %v927
    %v931 = vxor.u32 %v747, 2147483648
    %v932 = vxor.u32 %v748, 2147483648
    %v933 = vmul.f32 %v931, 1.442695
    %v934 = vpow.pop %v933
    %v935 = vmul.f32 %v932, 1.442695
    %v936 = vpow.pop %v935
    %v937 = vadd.f32 %v934, 1.0
    %v938 = vadd.f32 %v936, 1.0
    %v939 = vrcp.pop %v937
    %v940 = vmul.f32 1.0, %v939
    %v941 = vrcp.pop %v938
    %v942 = vmul.f32 1.0, %v941
    %v943 = vmul.f32 %v747, %v940
    %v944 = vmul.f32 %v748, %v942
    %v945 = vpack.c.bf16 %v944, %v943
    %v947 = vlaneseq
    %v948 = vshrl.u32 %v947, 7
    %v949 = vsub.s32 0, %v948
    %v950 = vrot.slane %v835, %v949
    %v1032 = vunpack.c.l.b16 %v754
    %v1033 = vunpack.c.l.b16 %v755
    %v1034 = vunpack.c.l.b16 %v756
    %v1035 = vunpack.c.l.b16 %v757
    %v1036 = vunpack.c.l.b16 %v758
    %v1037 = vunpack.c.l.b16 %v759
    %v1038 = vunpack.c.l.b16 %v760
    %v1039 = vunpack.c.l.b16 %v761
    %v1040 = vunpack.c.l.b16 %v762
    %v1041 = vunpack.c.l.b16 %v763
    %v1042 = vunpack.c.l.b16 %v764
    %v1043 = vunpack.c.l.b16 %v765
    %v1044 = vunpack.c.l.b16 %v766
    %v1045 = vunpack.c.l.b16 %v767
    %v1046 = vunpack.c.l.b16 %v768
    %v1047 = vunpack.c.l.b16 %v769
    %v1048 = vunpack.c.l.b16 %v770
    %v1049 = vunpack.c.l.b16 %v771
    %v1050 = vunpack.c.l.b16 %v772
    %v1051 = vunpack.c.l.b16 %v773
    %v1052 = vunpack.c.l.b16 %v774
    %v1053 = vunpack.c.l.b16 %v775
    %v1054 = vunpack.c.l.b16 %v776
    %v1055 = vunpack.c.l.b16 %v777
    %v1056 = vunpack.c.l.b16 %v778
    %v1057 = vunpack.c.l.b16 %v779
    %v1058 = vunpack.c.l.b16 %v780
    %v1059 = vunpack.c.l.b16 %v781
    %v1060 = vunpack.c.l.b16 %v782
    %v1061 = vunpack.c.l.b16 %v783
    %v1062 = vunpack.c.l.b16 %v784
    %v1063 = vunpack.c.l.b16 %v785
    %v1064 = vunpack.c.l.b16 %v786
    %v1065 = vunpack.c.l.b16 %v787
    %v1066 = vunpack.c.l.b16 %v788
    %v1067 = vunpack.c.l.b16 %v789
    %v1068 = vunpack.c.l.b16 %v790
    %v1069 = vunpack.c.l.b16 %v791
    %v1070 = vunpack.c.l.b16 %v792
    %v1071 = vunpack.c.l.b16 %v793
    %v1072 = vunpack.c.l.b16 %v794
    %v1073 = vunpack.c.l.b16 %v795
    %v1074 = vunpack.c.l.b16 %v796
    %v1075 = vunpack.c.l.b16 %v797
    %v1076 = vunpack.c.l.b16 %v798
    %v1077 = vunpack.c.l.b16 %v799
    %v1078 = vunpack.c.l.b16 %v800
    %v1079 = vunpack.c.l.b16 %v801
    %v1080 = vunpack.c.l.b16 %v802
    %v1081 = vunpack.c.l.b16 %v803
    %v1082 = vunpack.c.l.b16 %v804
    %v1083 = vunpack.c.l.b16 %v805
    %v1084 = vunpack.c.l.b16 %v806
    %v1085 = vunpack.c.l.b16 %v807
    %v1086 = vunpack.c.l.b16 %v808
    %v1087 = vunpack.c.l.b16 %v809
    %v1088 = vunpack.c.l.b16 %v810
    %v1089 = vunpack.c.l.b16 %v811
    %v1090 = vunpack.c.l.b16 %v812
    %v1091 = vunpack.c.l.b16 %v813
    %v1092 = vunpack.c.l.b16 %v814
    %v1093 = vunpack.c.l.b16 %v815
    %v1094 = vunpack.c.l.b16 %v816
    %v1095 = vunpack.c.l.b16 %v817
    %v1096 = vunpack.c.l.b16 %v818
    %v1097 = vunpack.c.l.b16 %v819
    %v1098 = vunpack.c.l.b16 %v820
    %v1099 = vunpack.c.l.b16 %v821
    %v1100 = vunpack.c.l.b16 %v822
    %v1101 = vunpack.c.l.b16 %v823
    %v1102 = vunpack.c.l.b16 %v824
    %v1103 = vunpack.c.l.b16 %v825
    %v1104 = vunpack.c.l.b16 %v826
    %v1105 = vunpack.c.l.b16 %v827
    %v1106 = vunpack.c.l.b16 %v828
    %v1107 = vunpack.c.l.b16 %v829
    %v1108 = vunpack.c.l.b16 %v830
    %v1109 = vunpack.c.l.b16 %v831
    %v1110 = vunpack.c.l.b16 %v832
    %v1111 = vunpack.c.l.b16 %v833
    %v1112 = vpack.c.b16 %v1033, %v1032
    %v1113 = vpack.c.b16 %v1035, %v1034
    %v1114 = vpack.c.b16 %v1037, %v1036
    %v1115 = vpack.c.b16 %v1039, %v1038
    %v1116 = vpack.c.b16 %v1041, %v1040
    %v1117 = vpack.c.b16 %v1043, %v1042
    %v1118 = vpack.c.b16 %v1045, %v1044
    %v1119 = vpack.c.b16 %v1047, %v1046
    %v1120 = vpack.c.b16 %v1049, %v1048
    %v1121 = vpack.c.b16 %v1051, %v1050
    %v1122 = vpack.c.b16 %v1053, %v1052
    %v1123 = vpack.c.b16 %v1055, %v1054
    %v1124 = vpack.c.b16 %v1057, %v1056
    %v1125 = vpack.c.b16 %v1059, %v1058
    %v1126 = vpack.c.b16 %v1061, %v1060
    %v1127 = vpack.c.b16 %v1063, %v1062
    %v1128 = vpack.c.b16 %v1065, %v1064
    %v1129 = vpack.c.b16 %v1067, %v1066
    %v1130 = vpack.c.b16 %v1069, %v1068
    %v1131 = vpack.c.b16 %v1071, %v1070
    %v1132 = vpack.c.b16 %v1073, %v1072
    %v1133 = vpack.c.b16 %v1075, %v1074
    %v1134 = vpack.c.b16 %v1077, %v1076
    %v1135 = vpack.c.b16 %v1079, %v1078
    %v1136 = vpack.c.b16 %v1081, %v1080
    %v1137 = vpack.c.b16 %v1083, %v1082
    %v1138 = vpack.c.b16 %v1085, %v1084
    %v1139 = vpack.c.b16 %v1087, %v1086
    %v1140 = vpack.c.b16 %v1089, %v1088
    %v1141 = vpack.c.b16 %v1091, %v1090
    %v1142 = vpack.c.b16 %v1093, %v1092
    %v1143 = vpack.c.b16 %v1095, %v1094
    %v1144 = vpack.c.b16 %v1097, %v1096
    %v1145 = vpack.c.b16 %v1099, %v1098
    %v1146 = vpack.c.b16 %v1101, %v1100
    %v1147 = vpack.c.b16 %v1103, %v1102
    %v1148 = vpack.c.b16 %v1105, %v1104
    %v1149 = vpack.c.b16 %v1107, %v1106
    %v1150 = vpack.c.b16 %v1109, %v1108
    %v1151 = vpack.c.b16 %v1111, %v1110
    %1192 = vmatprep.subr.bf16.mxu0 0
    %1193 = vmatpush1.bf16.msra.mxu0 %v1112
    %1194 = vmatprep.subr.bf16.mxu0 0
    %1195 = vmatpush1.bf16.msra.mxu0 %v1113
    %1196 = vmatprep.subr.bf16.mxu0 0
    %1197 = vmatpush1.bf16.msra.mxu0 %v1114
    %1198 = vmatprep.subr.bf16.mxu0 0
    %1199 = vmatpush1.bf16.msra.mxu0 %v1115
    %1200 = vmatprep.subr.bf16.mxu0 0
    %1201 = vmatpush1.bf16.msra.mxu0 %v1116
    %1202 = vmatprep.subr.bf16.mxu0 0
    %1203 = vmatpush1.bf16.msra.mxu0 %v1117
    %1204 = vmatprep.subr.bf16.mxu0 0
    %1205 = vmatpush1.bf16.msra.mxu0 %v1118
    %1206 = vmatprep.subr.bf16.mxu0 0
    %1207 = vmatpush1.bf16.msra.mxu0 %v1119
    %1208 = vmatprep.subr.bf16.mxu0 0
    %1209 = vmatpush1.bf16.msra.mxu0 %v1120
    %1210 = vmatprep.subr.bf16.mxu0 0
    %1211 = vmatpush1.bf16.msra.mxu0 %v1121
    %1212 = vmatprep.subr.bf16.mxu0 0
    %1213 = vmatpush1.bf16.msra.mxu0 %v1122
    %1214 = vmatprep.subr.bf16.mxu0 0
    %1215 = vmatpush1.bf16.msra.mxu0 %v1123
    %1216 = vmatprep.subr.bf16.mxu0 0
    %1217 = vmatpush1.bf16.msra.mxu0 %v1124
    %1218 = vmatprep.subr.bf16.mxu0 0
    %1219 = vmatpush1.bf16.msra.mxu0 %v1125
    %1220 = vmatprep.subr.bf16.mxu0 0
    %1221 = vmatpush1.bf16.msra.mxu0 %v1126
    %1222 = vmatprep.subr.bf16.mxu0 0
    %1223 = vmatpush1.bf16.msra.mxu0 %v1127
    %1224 = vmatprep.mubr.bf16.mxu0 %v904
    %1225 = vmatmul.mubr.bf16.gmra.mrb[0].mxu0 %v891
    %v1226 = vpop.f32.mrb[0].mxu0
    %v1227 = vadd.f32 %v950, %v1226
    %v1228 = vpop.f32.mrb[0].mxu0
    %v1229 = vpop.f32.mrb[0].mxu0
    %v1230 = vadd.f32 %v950, %v1229
    %v1231 = vpop.f32.mrb[0].mxu0
    %1232 = vdwg.mxu0
    %1233 = vmatprep.subr.bf16.mxu0 0
    %1234 = vmatpush1.bf16.msra.mxu0 %v1128
    %1235 = vmatprep.subr.bf16.mxu0 0
    %1236 = vmatpush1.bf16.msra.mxu0 %v1129
    %1237 = vmatprep.subr.bf16.mxu0 0
    %1238 = vmatpush1.bf16.msra.mxu0 %v1130
    %1239 = vmatprep.subr.bf16.mxu0 0
    %1240 = vmatpush1.bf16.msra.mxu0 %v1131
    %1241 = vmatprep.subr.bf16.mxu0 0
    %1242 = vmatpush1.bf16.msra.mxu0 %v1132
    %1243 = vmatprep.subr.bf16.mxu0 0
    %1244 = vmatpush1.bf16.msra.mxu0 %v1133
    %1245 = vmatprep.subr.bf16.mxu0 0
    %1246 = vmatpush1.bf16.msra.mxu0 %v1134
    %1247 = vmatprep.subr.bf16.mxu0 0
    %1248 = vmatpush1.bf16.msra.mxu0 %v1135
    %1249 = vmatprep.subr.bf16.mxu0 0
    %1250 = vmatpush1.bf16.msra.mxu0 %v1136
    %1251 = vmatprep.subr.bf16.mxu0 0
    %1252 = vmatpush1.bf16.msra.mxu0 %v1137
    %1253 = vmatprep.subr.bf16.mxu0 0
    %1254 = vmatpush1.bf16.msra.mxu0 %v1138
    %1255 = vmatprep.subr.bf16.mxu0 0
    %1256 = vmatpush1.bf16.msra.mxu0 %v1139
    %1257 = vmatprep.subr.bf16.mxu0 0
    %1258 = vmatpush1.bf16.msra.mxu0 %v1140
    %1259 = vmatprep.subr.bf16.mxu0 0
    %1260 = vmatpush1.bf16.msra.mxu0 %v1141
    %1261 = vmatprep.subr.bf16.mxu0 0
    %1262 = vmatpush1.bf16.msra.mxu0 %v1142
    %1263 = vmatprep.subr.bf16.mxu0 0
    %1264 = vmatpush1.bf16.msra.mxu0 %v1143
    %1265 = vmatprep.mubr.bf16.mxu0 %v930
    %1266 = vmatmul.mubr.bf16.gmra.mrb[0].mxu0 %v917
    %v1267 = vpop.f32.mrb[0].mxu0
    %v1268 = vadd.f32 %v1227, %v1267
    %v1269 = vpop.f32.mrb[0].mxu0
    %v1270 = vpop.f32.mrb[0].mxu0
    %v1271 = vadd.f32 %v1230, %v1270
    %v1272 = vpop.f32.mrb[0].mxu0
    %1273 = vdwg.mxu0
    %1274 = vmatprep.subr.bf16.mxu0 0
    %1275 = vmatpush1.bf16.msra.mxu0 %v1144
    %1276 = vmatprep.subr.bf16.mxu0 0
    %1277 = vmatpush1.bf16.msra.mxu0 %v1145
    %1278 = vmatprep.subr.bf16.mxu0 0
    %1279 = vmatpush1.bf16.msra.mxu0 %v1146
    %1280 = vmatprep.subr.bf16.mxu0 0
    %1281 = vmatpush1.bf16.msra.mxu0 %v1147
    %1282 = vmatprep.subr.bf16.mxu0 0
    %1283 = vmatpush1.bf16.msra.mxu0 %v1148
    %1284 = vmatprep.subr.bf16.mxu0 0
    %1285 = vmatpush1.bf16.msra.mxu0 %v1149
    %1286 = vmatprep.subr.bf16.mxu0 0
    %1287 = vmatpush1.bf16.msra.mxu0 %v1150
    %1288 = vmatprep.subr.bf16.mxu0 0
    %1289 = vmatpush1.bf16.msra.mxu0 %v1151
    %1290 = vmatprep.subr.bf16.mxu0 0
    %1291 = vmatpush1.bf16.msra.mxu0 0
    %1292 = vmatprep.subr.bf16.mxu0 0
    %1293 = vmatpush1.bf16.msra.mxu0 0
    %1294 = vmatprep.subr.bf16.mxu0 0
    %1295 = vmatpush1.bf16.msra.mxu0 0
    %1296 = vmatprep.subr.bf16.mxu0 0
    %1297 = vmatpush1.bf16.msra.mxu0 0
    %1298 = vmatprep.subr.bf16.mxu0 0
    %1299 = vmatpush1.bf16.msra.mxu0 0
    %1300 = vmatprep.subr.bf16.mxu0 0
    %1301 = vmatpush1.bf16.msra.mxu0 0
    %1302 = vmatprep.subr.bf16.mxu0 0
    %1303 = vmatpush1.bf16.msra.mxu0 0
    %1304 = vmatprep.subr.bf16.mxu0 0
    %1305 = vmatpush1.bf16.msra.mxu0 0
    %1306 = vmatprep.mubr.bf16.mxu0 0
    %1307 = vmatmul.mubr.bf16.gmra.mrb[0].mxu0 %v945
    %v1308 = vpop.f32.mrb[0].mxu0
    %v1309 = vadd.f32 %v1268, %v1308
    %v1310 = vpop.f32.mrb[0].mxu0
    %v1311 = vpop.f32.mrb[0].mxu0
    %v1312 = vadd.f32 %v1271, %v1311
    %v1313 = vpop.f32.mrb[0].mxu0
    %1314 = vdwg.mxu0
    %v1315 = vpack.c.bf16 %v1312, %v1309
    %s1316 = scalar_lea.vmem %s7, 1
    %v1317 = vld [vmem:[%s1316] sm:$0x1]
    %v1319 = vlaneseq
    %v1320 = vshrl.u32 %v1319, 7
    %v1321 = vsub.s32 0, %v1320
    %v1322 = vrot.slane %v1317, %v1321
    %1324 = vmatprep.subr.bf16.mxu0 0
    %1325 = vmatpush1.bf16.msra.mxu0 %v1315
    %1326 = vmatprep.subr.bf16.mxu0 0
    %1327 = vmatpush1.bf16.msra.mxu0 0
    %1328 = vmatprep.subr.bf16.mxu0 0
    %1329 = vmatpush1.bf16.msra.mxu0 0
    %1330 = vmatprep.subr.bf16.mxu0 0
    %1331 = vmatpush1.bf16.msra.mxu0 0
    %1332 = vmatprep.subr.bf16.mxu0 0
    %1333 = vmatpush1.bf16.msra.mxu0 0
    %1334 = vmatprep.subr.bf16.mxu0 0
    %1335 = vmatpush1.bf16.msra.mxu0 0
    %1336 = vmatprep.subr.bf16.mxu0 0
    %1337 = vmatpush1.bf16.msra.mxu0 0
    %1338 = vmatprep.subr.bf16.mxu0 0
    %1339 = vmatpush1.bf16.msra.mxu0 0
    %1340 = vmatprep.subr.bf16.mxu0 0
    %1341 = vmatpush1.bf16.msra.mxu0 0
    %1342 = vmatprep.subr.bf16.mxu0 0
    %1343 = vmatpush1.bf16.msra.mxu0 0
    %1344 = vmatprep.subr.bf16.mxu0 0
    %1345 = vmatpush1.bf16.msra.mxu0 0
    %1346 = vmatprep.subr.bf16.mxu0 0
    %1347 = vmatpush1.bf16.msra.mxu0 0
    %1348 = vmatprep.subr.bf16.mxu0 0
    %1349 = vmatpush1.bf16.msra.mxu0 0
    %1350 = vmatprep.subr.bf16.mxu0 0
    %1351 = vmatpush1.bf16.msra.mxu0 0
    %1352 = vmatprep.subr.bf16.mxu0 0
    %1353 = vmatpush1.bf16.msra.mxu0 0
    %1354 = vmatprep.subr.bf16.mxu0 0
    %1355 = vmatpush1.bf16.msra.mxu0 0
    %1356 = vmatprep.mubr.bf16.mxu0 0
    %1357 = vmatmul.mubr.bf16.gmra.mrb[0].mxu0 %v692
    %v1358 = vpop.f32.mrb[0].mxu0
    %v1359 = vadd.f32 %v1322, %v1358
    %v1360 = vpop.f32.mrb[0].mxu0
    %v1361 = vpop.f32.mrb[0].mxu0
    %v1362 = vadd.f32 %v1322, %v1361
    %v1363 = vpop.f32.mrb[0].mxu0
    %1364 = vdwg.mxu0
    %v1365 = vxor.u32 %v1359, 2147483648
    %v1366 = vxor.u32 %v1362, 2147483648
    %v1367 = vmul.f32 %v1365, 1.442695
    %v1368 = vpow.pop %v1367
    %v1369 = vmul.f32 %v1366, 1.442695
    %v1370 = vpow.pop %v1369
    %v1371 = vadd.f32 %v1368, 1.0
    %v1372 = vadd.f32 %v1370, 1.0
    %v1373 = vrcp.pop %v1371
    %v1374 = vmul.f32 1.0, %v1373
    %v1375 = vrcp.pop %v1372
    %v1376 = vmul.f32 1.0, %v1375
    %v1377 = vmul.f32 %v1359, %v1374
    %v1378 = vmul.f32 %v1362, %v1376
    %v1379 = vld [vmem:[#allocation5] sm:$0xf]
    %v1380 = vpack.c.bf16 %v1378, %v1377
    %v1382 = vsel %vm690, %v1379, 0
    %1384 = vmatprep.subr.bf16.mxu0 0
    %1385 = vmatpush1.bf16.msra.mxu0 %v1380
    %1386 = vmatprep.subr.bf16.mxu0 0
    %1387 = vmatpush1.bf16.msra.mxu0 0
    %1388 = vmatprep.subr.bf16.mxu0 0
    %1389 = vmatpush1.bf16.msra.mxu0 0
    %1390 = vmatprep.subr.bf16.mxu0 0
    %1391 = vmatpush1.bf16.msra.mxu0 0
    %1392 = vmatprep.subr.bf16.mxu0 0
    %1393 = vmatpush1.bf16.msra.mxu0 0
    %1394 = vmatprep.subr.bf16.mxu0 0
    %1395 = vmatpush1.bf16.msra.mxu0 0
    %1396 = vmatprep.subr.bf16.mxu0 0
    %1397 = vmatpush1.bf16.msra.mxu0 0
    %1398 = vmatprep.subr.bf16.mxu0 0
    %1399 = vmatpush1.bf16.msra.mxu0 0
    %1400 = vmatprep.subr.bf16.mxu0 0
    %1401 = vmatpush1.bf16.msra.mxu0 0
    %1402 = vmatprep.subr.bf16.mxu0 0
    %1403 = vmatpush1.bf16.msra.mxu0 0
    %1404 = vmatprep.subr.bf16.mxu0 0
    %1405 = vmatpush1.bf16.msra.mxu0 0
    %1406 = vmatprep.subr.bf16.mxu0 0
    %1407 = vmatpush1.bf16.msra.mxu0 0
    %1408 = vmatprep.subr.bf16.mxu0 0
    %1409 = vmatpush1.bf16.msra.mxu0 0
    %1410 = vmatprep.subr.bf16.mxu0 0
    %1411 = vmatpush1.bf16.msra.mxu0 0
    %1412 = vmatprep.subr.bf16.mxu0 0
    %1413 = vmatpush1.bf16.msra.mxu0 0
    %1414 = vmatprep.subr.bf16.mxu0 0
    %1415 = vmatpush1.bf16.msra.mxu0 0
    %1416 = vmatprep.mubr.bf16.mxu0 0
    %1417 = vmatmul.mubr.bf16.gmra.mrb[0].mxu0 %v1382
    %v1418 = vpop.f32.mrb[0].mxu0
    %v1419 = vadd.f32 0.0, %v1418
    %v1420 = vpop.f32.mrb[0].mxu0
    %v1421 = vpop.f32.mrb[0].mxu0
    %v1422 = vpop.f32.mrb[0].mxu0
    %1423 = vdwg.mxu0
    %v1424 = vld [vmem:[%s8] sm:$0x1]
    %v1425 = vld [vmem:[%s9] sm:$0x1]
    %v1426 = vld [vmem:[#allocation10] sm:$0xf]
    %v1427 = vld [vmem:[#allocation10 + $0x4] sm:$0xf]
    %v1428 = vld [vmem:[#allocation10 + $0x8] sm:$0xf]
    %v1429 = vld [vmem:[#allocation10 + $0xc] sm:$0xf]
    %v1430 = vld [vmem:[#allocation10 + $0x10] sm:$0xf]
    %v1431 = vld [vmem:[#allocation10 + $0x14] sm:$0xf]
    %v1432 = vld [vmem:[#allocation10 + $0x18] sm:$0xf]
    %v1433 = vld [vmem:[#allocation10 + $0x1c] sm:$0xf]
    %v1434 = vld [vmem:[#allocation10 + $0x20] sm:$0xf]
    %v1435 = vld [vmem:[#allocation10 + $0x24] sm:$0xf]
    %v1436 = vld [vmem:[#allocation10 + $0x28] sm:$0xf]
    %v1437 = vld [vmem:[#allocation10 + $0x2c] sm:$0xf]
    %v1438 = vld [vmem:[#allocation10 + $0x30] sm:$0xf]
    %v1439 = vld [vmem:[#allocation10 + $0x34] sm:$0xf]
    %v1440 = vld [vmem:[#allocation10 + $0x38] sm:$0xf]
    %v1441 = vld [vmem:[#allocation10 + $0x3c] sm:$0xf]
    %v1442 = vld [vmem:[#allocation10 + $0x40] sm:$0xf]
    %v1443 = vld [vmem:[#allocation10 + $0x44] sm:$0xf]
    %v1444 = vld [vmem:[#allocation10 + $0x48] sm:$0xf]
    %v1445 = vld [vmem:[#allocation10 + $0x4c] sm:$0xf]
    %v1446 = vld [vmem:[#allocation10 + $0x50] sm:$0xf]
    %v1447 = vld [vmem:[#allocation10 + $0x54] sm:$0xf]
    %v1448 = vld [vmem:[#allocation10 + $0x58] sm:$0xf]
    %v1449 = vld [vmem:[#allocation10 + $0x5c] sm:$0xf]
    %v1450 = vld [vmem:[#allocation10 + $0x60] sm:$0xf]
    %v1451 = vld [vmem:[#allocation10 + $0x64] sm:$0xf]
    %v1452 = vld [vmem:[#allocation10 + $0x68] sm:$0xf]
    %v1453 = vld [vmem:[#allocation10 + $0x6c] sm:$0xf]
    %v1454 = vld [vmem:[#allocation10 + $0x70] sm:$0xf]
    %v1455 = vld [vmem:[#allocation10 + $0x74] sm:$0xf]
    %v1456 = vld [vmem:[#allocation10 + $0x78] sm:$0xf]
    %v1457 = vld [vmem:[#allocation10 + $0x7c] sm:$0xf]
    %v1458 = vld [vmem:[#allocation10 + $0x80] sm:$0xf]
    %v1459 = vld [vmem:[#allocation10 + $0x84] sm:$0xf]
    %v1460 = vld [vmem:[#allocation10 + $0x88] sm:$0xf]
    %v1461 = vld [vmem:[#allocation10 + $0x8c] sm:$0xf]
    %v1462 = vld [vmem:[#allocation10 + $0x90] sm:$0xf]
    %v1463 = vld [vmem:[#allocation10 + $0x94] sm:$0xf]
    %v1464 = vld [vmem:[#allocation10 + $0x98] sm:$0xf]
    %v1465 = vld [vmem:[#allocation10 + $0x9c] sm:$0xf]
    %v1466 = vld [vmem:[#allocation10 + $0xa0] sm:$0xf]
    %v1467 = vld [vmem:[#allocation10 + $0xa4] sm:$0xf]
    %v1468 = vld [vmem:[#allocation10 + $0xa8] sm:$0xf]
    %v1469 = vld [vmem:[#allocation10 + $0xac] sm:$0xf]
    %v1470 = vld [vmem:[#allocation10 + $0xb0] sm:$0xf]
    %v1471 = vld [vmem:[#allocation10 + $0xb4] sm:$0xf]
    %v1472 = vld [vmem:[#allocation10 + $0xb8] sm:$0xf]
    %v1473 = vld [vmem:[#allocation10 + $0xbc] sm:$0xf]
    %v1474 = vld [vmem:[#allocation10 + $0xc0] sm:$0xf]
    %v1475 = vld [vmem:[#allocation10 + $0xc4] sm:$0xf]
    %v1476 = vld [vmem:[#allocation10 + $0xc8] sm:$0xf]
    %v1477 = vld [vmem:[#allocation10 + $0xcc] sm:$0xf]
    %v1478 = vld [vmem:[#allocation10 + $0xd0] sm:$0xf]
    %v1479 = vld [vmem:[#allocation10 + $0xd4] sm:$0xf]
    %v1480 = vld [vmem:[#allocation10 + $0xd8] sm:$0xf]
    %v1481 = vld [vmem:[#allocation10 + $0xdc] sm:$0xf]
    %v1482 = vld [vmem:[#allocation10 + $0xe0] sm:$0xf]
    %v1483 = vld [vmem:[#allocation10 + $0xe4] sm:$0xf]
    %v1484 = vld [vmem:[#allocation10 + $0xe8] sm:$0xf]
    %v1485 = vld [vmem:[#allocation10 + $0xec] sm:$0xf]
    %v1486 = vld [vmem:[#allocation10 + $0xf0] sm:$0xf]
    %v1487 = vld [vmem:[#allocation10 + $0xf4] sm:$0xf]
    %v1488 = vld [vmem:[#allocation10 + $0xf8] sm:$0xf]
    %v1489 = vld [vmem:[#allocation10 + $0xfc] sm:$0xf]
    %v1490 = vld [vmem:[#allocation10 + $0x100] sm:$0xf]
    %v1491 = vld [vmem:[#allocation10 + $0x104] sm:$0xf]
    %v1492 = vld [vmem:[#allocation10 + $0x108] sm:$0xf]
    %v1493 = vld [vmem:[#allocation10 + $0x10c] sm:$0xf]
    %v1494 = vld [vmem:[#allocation10 + $0x110] sm:$0xf]
    %v1495 = vld [vmem:[#allocation10 + $0x114] sm:$0xf]
    %v1496 = vld [vmem:[#allocation10 + $0x118] sm:$0xf]
    %v1497 = vld [vmem:[#allocation10 + $0x11c] sm:$0xf]
    %v1498 = vld [vmem:[#allocation10 + $0x120] sm:$0xf]
    %v1499 = vld [vmem:[#allocation10 + $0x124] sm:$0xf]
    %v1500 = vld [vmem:[#allocation10 + $0x128] sm:$0xf]
    %v1501 = vld [vmem:[#allocation10 + $0x12c] sm:$0xf]
    %v1502 = vld [vmem:[#allocation10 + $0x130] sm:$0xf]
    %v1503 = vld [vmem:[#allocation10 + $0x134] sm:$0xf]
    %v1504 = vld [vmem:[#allocation10 + $0x138] sm:$0xf]
    %v1505 = vld [vmem:[#allocation10 + $0x13c] sm:$0xf]
    %v1506 = vld [vmem:[%s11] sm:$0x1]
    %1507 = vadd.xlane.f32.xlu0 %v1419
    %v1508 = vpop.xlane.xlu0 %1507
    %v1509 = vmul.f32 %v1508, 0.03125
    %v1510 = vsub.f32 %v1419, %v1509
    %v1511 = vmul.f32 %v1510, %v838
    %v1512 = vmul.f32 %v1511, %v1511
    %1513 = vadd.xlane.f32.xlu0 %v1512
    %v1514 = vpop.xlane.xlu0 %1513
    %v1515 = vmul.f32 %v1514, 0.03125
    %v1516 = vadd.f32 %v1515, 1e-05
    %v1517 = vrsqrt.pop %v1516
    %v1518 = vmul.f32 %v1511, %v1517
    %v1520 = vlaneseq
    %v1521 = vshrl.u32 %v1520, 7
    %v1522 = vsub.s32 0, %v1521
    %v1523 = vrot.slane %v1424, %v1522
    %v1525 = vmul.f32 %v1518, %v1523
    %v1527 = vlaneseq
    %v1528 = vshrl.u32 %v1527, 7
    %v1529 = vsub.s32 0, %v1528
    %v1530 = vrot.slane %v1425, %v1529
    %v1532 = vadd.f32 %v1525, %v1530
    %v1533 = vsub.f32 %v1532, -2.0
    %v1534 = vmul.f32 %v1533, 0.75
    %v1535 = vmul.f32 %v1534, %v1534
    %v1536 = vsub.f32 0.0, %v1535
    %v1537 = vmul.f32 %v1536, 1.442695
    %v1538 = vpow.pop %v1537
    %v1539 = vpack.c.bf16 %v1538, %v1538
    %v1540 = vsub.f32 %v1532, -0.6666667
    %v1541 = vmul.f32 %v1540, 0.75
    %v1542 = vmul.f32 %v1541, %v1541
    %v1543 = vsub.f32 0.0, %v1542
    %v1544 = vmul.f32 %v1543, 1.442695
    %v1545 = vpow.pop %v1544
    %v1546 = vpack.c.bf16 %v1545, %v1545
    %v1547 = vsub.f32 %v1532, 0.6666667
    %v1548 = vmul.f32 %v1547, 0.75
    %v1549 = vmul.f32 %v1548, %v1548
    %v1550 = vsub.f32 0.0, %v1549
    %v1551 = vmul.f32 %v1550, 1.442695
    %v1552 = vpow.pop %v1551
    %v1553 = vpack.c.bf16 %v1552, %v1552
    %v1554 = vsub.f32 %v1532, 2.0
    %v1555 = vmul.f32 %v1554, 0.75
    %v1556 = vmul.f32 %v1555, %v1555
    %v1557 = vsub.f32 0.0, %v1556
    %v1558 = vmul.f32 %v1557, 1.442695
    %v1559 = vpow.pop %v1558
    %v1560 = vpack.c.bf16 %v1559, %v1559
    %v1561 = vxor.u32 %v1419, 2147483648
    %v1562 = vmul.f32 %v1561, 1.442695
    %v1563 = vpow.pop %v1562
    %v1564 = vadd.f32 %v1563, 1.0
    %v1565 = vrcp.pop %v1564
    %v1566 = vmul.f32 1.0, %v1565
    %v1567 = vmul.f32 %v1419, %v1566
    %v1568 = vpack.c.bf16 %v1567, %v1567
    %v1570 = vlaneseq
    %v1571 = vshrl.u32 %v1570, 7
    %v1572 = vsub.s32 0, %v1571
    %v1573 = vrot.slane %v1506, %v1572
    %v1655 = vunpack.c.l.b16 %v1426
    %v1656 = vunpack.c.l.b16 %v1427
    %v1657 = vunpack.c.l.b16 %v1428
    %v1658 = vunpack.c.l.b16 %v1429
    %v1659 = vunpack.c.l.b16 %v1430
    %v1660 = vunpack.c.l.b16 %v1431
    %v1661 = vunpack.c.l.b16 %v1432
    %v1662 = vunpack.c.l.b16 %v1433
    %v1663 = vunpack.c.l.b16 %v1434
    %v1664 = vunpack.c.l.b16 %v1435
    %v1665 = vunpack.c.l.b16 %v1436
    %v1666 = vunpack.c.l.b16 %v1437
    %v1667 = vunpack.c.l.b16 %v1438
    %v1668 = vunpack.c.l.b16 %v1439
    %v1669 = vunpack.c.l.b16 %v1440
    %v1670 = vunpack.c.l.b16 %v1441
    %v1671 = vunpack.c.l.b16 %v1442
    %v1672 = vunpack.c.l.b16 %v1443
    %v1673 = vunpack.c.l.b16 %v1444
    %v1674 = vunpack.c.l.b16 %v1445
    %v1675 = vunpack.c.l.b16 %v1446
    %v1676 = vunpack.c.l.b16 %v1447
    %v1677 = vunpack.c.l.b16 %v1448
    %v1678 = vunpack.c.l.b16 %v1449
    %v1679 = vunpack.c.l.b16 %v1450
    %v1680 = vunpack.c.l.b16 %v1451
    %v1681 = vunpack.c.l.b16 %v1452
    %v1682 = vunpack.c.l.b16 %v1453
    %v1683 = vunpack.c.l.b16 %v1454
    %v1684 = vunpack.c.l.b16 %v1455
    %v1685 = vunpack.c.l.b16 %v1456
    %v1686 = vunpack.c.l.b16 %v1457
    %v1687 = vunpack.c.l.b16 %v1458
    %v1688 = vunpack.c.l.b16 %v1459
    %v1689 = vunpack.c.l.b16 %v1460
    %v1690 = vunpack.c.l.b16 %v1461
    %v1691 = vunpack.c.l.b16 %v1462
    %v1692 = vunpack.c.l.b16 %v1463
    %v1693 = vunpack.c.l.b16 %v1464
    %v1694 = vunpack.c.l.b16 %v1465
    %v1695 = vunpack.c.l.b16 %v1466
    %v1696 = vunpack.c.l.b16 %v1467
    %v1697 = vunpack.c.l.b16 %v1468
    %v1698 = vunpack.c.l.b16 %v1469
    %v1699 = vunpack.c.l.b16 %v1470
    %v1700 = vunpack.c.l.b16 %v1471
    %v1701 = vunpack.c.l.b16 %v1472
    %v1702 = vunpack.c.l.b16 %v1473
    %v1703 = vunpack.c.l.b16 %v1474
    %v1704 = vunpack.c.l.b16 %v1475
    %v1705 = vunpack.c.l.b16 %v1476
    %v1706 = vunpack.c.l.b16 %v1477
    %v1707 = vunpack.c.l.b16 %v1478
    %v1708 = vunpack.c.l.b16 %v1479
    %v1709 = vunpack.c.l.b16 %v1480
    %v1710 = vunpack.c.l.b16 %v1481
    %v1711 = vunpack.c.l.b16 %v1482
    %v1712 = vunpack.c.l.b16 %v1483
    %v1713 = vunpack.c.l.b16 %v1484
    %v1714 = vunpack.c.l.b16 %v1485
    %v1715 = vunpack.c.l.b16 %v1486
    %v1716 = vunpack.c.l.b16 %v1487
    %v1717 = vunpack.c.l.b16 %v1488
    %v1718 = vunpack.c.l.b16 %v1489
    %v1719 = vunpack.c.l.b16 %v1490
    %v1720 = vunpack.c.l.b16 %v1491
    %v1721 = vunpack.c.l.b16 %v1492
    %v1722 = vunpack.c.l.b16 %v1493
    %v1723 = vunpack.c.l.b16 %v1494
    %v1724 = vunpack.c.l.b16 %v1495
    %v1725 = vunpack.c.l.b16 %v1496
    %v1726 = vunpack.c.l.b16 %v1497
    %v1727 = vunpack.c.l.b16 %v1498
    %v1728 = vunpack.c.l.b16 %v1499
    %v1729 = vunpack.c.l.b16 %v1500
    %v1730 = vunpack.c.l.b16 %v1501
    %v1731 = vunpack.c.l.b16 %v1502
    %v1732 = vunpack.c.l.b16 %v1503
    %v1733 = vunpack.c.l.b16 %v1504
    %v1734 = vunpack.c.l.b16 %v1505
    %v1735 = vpack.c.b16 %v1656, %v1655
    %v1736 = vpack.c.b16 %v1658, %v1657
    %v1737 = vpack.c.b16 %v1660, %v1659
    %v1738 = vpack.c.b16 %v1662, %v1661
    %v1739 = vpack.c.b16 %v1664, %v1663
    %v1740 = vpack.c.b16 %v1666, %v1665
    %v1741 = vpack.c.b16 %v1668, %v1667
    %v1742 = vpack.c.b16 %v1670, %v1669
    %v1743 = vpack.c.b16 %v1672, %v1671
    %v1744 = vpack.c.b16 %v1674, %v1673
    %v1745 = vpack.c.b16 %v1676, %v1675
    %v1746 = vpack.c.b16 %v1678, %v1677
    %v1747 = vpack.c.b16 %v1680, %v1679
    %v1748 = vpack.c.b16 %v1682, %v1681
    %v1749 = vpack.c.b16 %v1684, %v1683
    %v1750 = vpack.c.b16 %v1686, %v1685
    %v1751 = vpack.c.b16 %v1688, %v1687
    %v1752 = vpack.c.b16 %v1690, %v1689
    %v1753 = vpack.c.b16 %v1692, %v1691
    %v1754 = vpack.c.b16 %v1694, %v1693
    %v1755 = vpack.c.b16 %v1696, %v1695
    %v1756 = vpack.c.b16 %v1698, %v1697
    %v1757 = vpack.c.b16 %v1700, %v1699
    %v1758 = vpack.c.b16 %v1702, %v1701
    %v1759 = vpack.c.b16 %v1704, %v1703
    %v1760 = vpack.c.b16 %v1706, %v1705
    %v1761 = vpack.c.b16 %v1708, %v1707
    %v1762 = vpack.c.b16 %v1710, %v1709
    %v1763 = vpack.c.b16 %v1712, %v1711
    %v1764 = vpack.c.b16 %v1714, %v1713
    %v1765 = vpack.c.b16 %v1716, %v1715
    %v1766 = vpack.c.b16 %v1718, %v1717
    %v1767 = vpack.c.b16 %v1720, %v1719
    %v1768 = vpack.c.b16 %v1722, %v1721
    %v1769 = vpack.c.b16 %v1724, %v1723
    %v1770 = vpack.c.b16 %v1726, %v1725
    %v1771 = vpack.c.b16 %v1728, %v1727
    %v1772 = vpack.c.b16 %v1730, %v1729
    %v1773 = vpack.c.b16 %v1732, %v1731
    %v1774 = vpack.c.b16 %v1734, %v1733
    %1815 = vmatprep.subr.bf16.mxu0 0
    %1816 = vmatpush1.bf16.msra.mxu0 %v1735
    %1817 = vmatprep.subr.bf16.mxu0 0
    %1818 = vmatpush1.bf16.msra.mxu0 %v1736
    %1819 = vmatprep.subr.bf16.mxu0 0
    %1820 = vmatpush1.bf16.msra.mxu0 %v1737
    %1821 = vmatprep.subr.bf16.mxu0 0
    %1822 = vmatpush1.bf16.msra.mxu0 %v1738
    %1823 = vmatprep.subr.bf16.mxu0 0
    %1824 = vmatpush1.bf16.msra.mxu0 %v1739
    %1825 = vmatprep.subr.bf16.mxu0 0
    %1826 = vmatpush1.bf16.msra.mxu0 %v1740
    %1827 = vmatprep.subr.bf16.mxu0 0
    %1828 = vmatpush1.bf16.msra.mxu0 %v1741
    %1829 = vmatprep.subr.bf16.mxu0 0
    %1830 = vmatpush1.bf16.msra.mxu0 %v1742
    %1831 = vmatprep.subr.bf16.mxu0 0
    %1832 = vmatpush1.bf16.msra.mxu0 %v1743
    %1833 = vmatprep.subr.bf16.mxu0 0
    %1834 = vmatpush1.bf16.msra.mxu0 %v1744
    %1835 = vmatprep.subr.bf16.mxu0 0
    %1836 = vmatpush1.bf16.msra.mxu0 %v1745
    %1837 = vmatprep.subr.bf16.mxu0 0
    %1838 = vmatpush1.bf16.msra.mxu0 %v1746
    %1839 = vmatprep.subr.bf16.mxu0 0
    %1840 = vmatpush1.bf16.msra.mxu0 %v1747
    %1841 = vmatprep.subr.bf16.mxu0 0
    %1842 = vmatpush1.bf16.msra.mxu0 %v1748
    %1843 = vmatprep.subr.bf16.mxu0 0
    %1844 = vmatpush1.bf16.msra.mxu0 %v1749
    %1845 = vmatprep.subr.bf16.mxu0 0
    %1846 = vmatpush1.bf16.msra.mxu0 %v1750
    %1847 = vmatprep.mubr.bf16.mxu0 %v1546
    %1848 = vmatmul.mubr.bf16.gmra.mrb[0].mxu0 %v1539
    %v1849 = vpop.f32.mrb[0].mxu0
    %v1850 = vadd.f32 %v1573, %v1849
    %v1851 = vpop.f32.mrb[0].mxu0
    %v1852 = vpop.f32.mrb[0].mxu0
    %v1853 = vpop.f32.mrb[0].mxu0
    %1854 = vdwg.mxu0
    %1855 = vmatprep.subr.bf16.mxu0 0
    %1856 = vmatpush1.bf16.msra.mxu0 %v1751
    %1857 = vmatprep.subr.bf16.mxu0 0
    %1858 = vmatpush1.bf16.msra.mxu0 %v1752
    %1859 = vmatprep.subr.bf16.mxu0 0
    %1860 = vmatpush1.bf16.msra.mxu0 %v1753
    %1861 = vmatprep.subr.bf16.mxu0 0
    %1862 = vmatpush1.bf16.msra.mxu0 %v1754
    %1863 = vmatprep.subr.bf16.mxu0 0
    %1864 = vmatpush1.bf16.msra.mxu0 %v1755
    %1865 = vmatprep.subr.bf16.mxu0 0
    %1866 = vmatpush1.bf16.msra.mxu0 %v1756
    %1867 = vmatprep.subr.bf16.mxu0 0
    %1868 = vmatpush1.bf16.msra.mxu0 %v1757
    %1869 = vmatprep.subr.bf16.mxu0 0
    %1870 = vmatpush1.bf16.msra.mxu0 %v1758
    %1871 = vmatprep.subr.bf16.mxu0 0
    %1872 = vmatpush1.bf16.msra.mxu0 %v1759
    %1873 = vmatprep.subr.bf16.mxu0 0
    %1874 = vmatpush1.bf16.msra.mxu0 %v1760
    %1875 = vmatprep.subr.bf16.mxu0 0
    %1876 = vmatpush1.bf16.msra.mxu0 %v1761
    %1877 = vmatprep.subr.bf16.mxu0 0
    %1878 = vmatpush1.bf16.msra.mxu0 %v1762
    %1879 = vmatprep.subr.bf16.mxu0 0
    %1880 = vmatpush1.bf16.msra.mxu0 %v1763
    %1881 = vmatprep.subr.bf16.mxu0 0
    %1882 = vmatpush1.bf16.msra.mxu0 %v1764
    %1883 = vmatprep.subr.bf16.mxu0 0
    %1884 = vmatpush1.bf16.msra.mxu0 %v1765
    %1885 = vmatprep.subr.bf16.mxu0 0
    %1886 = vmatpush1.bf16.msra.mxu0 %v1766
    %1887 = vmatprep.mubr.bf16.mxu0 %v1560
    %1888 = vmatmul.mubr.bf16.gmra.mrb[0].mxu0 %v1553
    %v1889 = vpop.f32.mrb[0].mxu0
    %v1890 = vadd.f32 %v1850, %v1889
    %v1891 = vpop.f32.mrb[0].mxu0
    %v1892 = vpop.f32.mrb[0].mxu0
    %v1893 = vpop.f32.mrb[0].mxu0
    %1894 = vdwg.mxu0
    %1895 = vmatprep.subr.bf16.mxu0 0
    %1896 = vmatpush1.bf16.msra.mxu0 %v1767
    %1897 = vmatprep.subr.bf16.mxu0 0
    %1898 = vmatpush1.bf16.msra.mxu0 %v1768
    %1899 = vmatprep.subr.bf16.mxu0 0
    %1900 = vmatpush1.bf16.msra.mxu0 %v1769
    %1901 = vmatprep.subr.bf16.mxu0 0
    %1902 = vmatpush1.bf16.msra.mxu0 %v1770
    %1903 = vmatprep.subr.bf16.mxu0 0
    %1904 = vmatpush1.bf16.msra.mxu0 %v1771
    %1905 = vmatprep.subr.bf16.mxu0 0
    %1906 = vmatpush1.bf16.msra.mxu0 %v1772
    %1907 = vmatprep.subr.bf16.mxu0 0
    %1908 = vmatpush1.bf16.msra.mxu0 %v1773
    %1909 = vmatprep.subr.bf16.mxu0 0
    %1910 = vmatpush1.bf16.msra.mxu0 %v1774
    %1911 = vmatprep.subr.bf16.mxu0 0
    %1912 = vmatpush1.bf16.msra.mxu0 0
    %1913 = vmatprep.subr.bf16.mxu0 0
    %1914 = vmatpush1.bf16.msra.mxu0 0
    %1915 = vmatprep.subr.bf16.mxu0 0
    %1916 = vmatpush1.bf16.msra.mxu0 0
    %1917 = vmatprep.subr.bf16.mxu0 0
    %1918 = vmatpush1.bf16.msra.mxu0 0
    %1919 = vmatprep.subr.bf16.mxu0 0
    %1920 = vmatpush1.bf16.msra.mxu0 0
    %1921 = vmatprep.subr.bf16.mxu0 0
    %1922 = vmatpush1.bf16.msra.mxu0 0
    %1923 = vmatprep.subr.bf16.mxu0 0
    %1924 = vmatpush1.bf16.msra.mxu0 0
    %1925 = vmatprep.subr.bf16.mxu0 0
    %1926 = vmatpush1.bf16.msra.mxu0 0
    %1927 = vmatprep.mubr.bf16.mxu0 0
    %1928 = vmatmul.mubr.bf16.gmra.mrb[0].mxu0 %v1568
    %v1929 = vpop.f32.mrb[0].mxu0
    %v1930 = vadd.f32 %v1890, %v1929
    %v1931 = vpop.f32.mrb[0].mxu0
    %v1932 = vpop.f32.mrb[0].mxu0
    %v1933 = vpop.f32.mrb[0].mxu0
    %1934 = vdwg.mxu0
    %vm1935 = vcmp.lt.s32.totalorder %v197, 4
    %v1936 = vsel %vm1935, %v1930, -1e+30
    %1937 = vmax.xlane.f32.xlu0 %v1936
    %v1938 = vpop.xlane.xlu0 %1937
    %v1939 = vsub.f32 %v1930, %v1938
    %v1940 = vmul.f32 %v1939, 1.442695
    %v1941 = vpow.pop %v1940
    %v1942 = vsel %vm1935, %v1941, 0.0
    %1943 = vadd.xlane.f32.xlu0 %v1942
    %v1944 = vpop.xlane.xlu0 %1943
    %v1945 = vlog2.pop %v1944
    %v1946 = vmul.f32 %v1945, 0.6931472
    %v1947 = vsub.f32 %v1939, %v1946
    %1948 = vst [vmem:[#allocation11] sm:$0xff] %v1947
    // Predicated region
    $region70: #{_lambda_.1} parent=1 // pred_check
      _
    $region71: #{_lambda_.1} parent=1 // pred_check_branch
      %1950 = sbr.rel (0) target = $region73
    $region72: #{_lambda_.1} parent=1 // pred_region
      %s1952 = ssub.s32 128, 128
      %1953 = vsyncadd [#allocation4], %s1952
      %s1955 = sshll.u32 [#allocation11], 4
      %s1956 = int_to_ptr.vmem [resolvable:$true] %s1955
      %1958 = dma.vmem_to_hbm [thread:$0]  %s1956, 128, %s12, [#allocation4]
    $region73: #{_lambda_.1} parent=1 // pred_fallthru
      _
    // Predicated region
    $region74: #{_lambda_.1} parent=1 // pred_check
      _
    $region75: #{_lambda_.1} parent=1 // pred_check_branch
      %1960 = sbr.rel (0) target = $region77
    $region76: #{_lambda_.1} parent=1 // pred_region
      %1961 = dma.done [#allocation4], 128
    $region77: #{_lambda_.1} parent=1 // pred_fallthru
      _
    %1962 = vsyncpa [#allocation3], 1
    %1963 = vsyncpa [#allocation6], 1
    %1964 = vsyncpa [#allocation9], 1
    %1965 = vsyncpa [#allocation4], 1

</llo_original>
